<compile_context>
chip_gen: v6e
topology: v6e:2x2x1
jax: 0.10.0
libtpu: 0.0.40
codegen_flags: <defaults>
</compile_context>

<pallas_src>
import functools

import jax
import jax.numpy as jnp
import numpy as np
from jax.experimental import pallas as pl
from jax.experimental.pallas import tpu as pltpu

EPS = 1e-5
_LANE = 128


# --------------------------------------------------------------------------
# Helpers: padding, row-tile planning, VMEM budget
# --------------------------------------------------------------------------
def _round_up(x, m):
    return (x + m - 1) // m * m


def _pad2(a, shape):
    return jnp.pad(a, [(0, t - s) for s, t in zip(a.shape, shape)])


def _pad_last(a, to):
    if a.shape[-1] == to:
        return a
    pads = [(0, 0)] * (a.ndim - 1) + [(0, to - a.shape[-1])]
    return jnp.pad(a, pads)


def _vmem_limit_bytes(need_bytes):
    """Derive the scoped-VMEM request from the actual chip capacity."""
    try:
        cap = int(pltpu.get_tpu_info().vmem_capacity_bytes)
    except Exception:  # conservative fallback (e.g. interpret mode)
        cap = 64 << 20
    return int(min(max(2 * need_bytes, 8 << 20), (cap * 3) // 4))


def _plan_rows(M):
    """Row tiling for the matmul kernel: big tiles, but >=2 row blocks when the
    problem allows it so both v7x TensorCores get work."""
    m16 = _round_up(max(M, 1), 16)          # bf16 sublane packing
    if m16 >= 1024:
        tm = 512
    elif m16 >= 64 and m16 % 32 == 0:
        tm = m16 // 2                       # exactly two row blocks
    else:
        tm = m16
    return _round_up(m16, tm), tm


# --------------------------------------------------------------------------
# Kernel A: conv1 as im2col matmul with a fully VMEM-resident weight panel.
#   out = relu(patches @ W_scaled + bias)     (no K grid axis, no accumulator)
# --------------------------------------------------------------------------
def _mm_bias_relu_kernel(p_ref, w_ref, b_ref, o_ref):
    acc = jnp.dot(p_ref[...], w_ref[...], preferred_element_type=jnp.float32)
    acc = acc + b_ref[...]
    o_ref[...] = jnp.maximum(acc, 0.0).astype(o_ref.dtype)


def _matmul_bias_relu_pallas(patches, w_folded, bias, out_dtype):
    """Returns relu(patches @ w + bias) with rows sliced to M and channels left
    lane-padded (the consumer kernel wants padded channels anyway)."""
    M, K = patches.shape
    _, N = w_folded.shape
    K_pad = _round_up(K, _LANE)
    N_pad = _round_up(N, _LANE)
    M_pad, TM = _plan_rows(M)

    # TODO(synk): add a K-tiled accumulation fallback for weight panels that do not
    # fit in VMEM (never triggers for ResNet blocks up to 512 channels, ~4.7 MiB).
    if 2 * K_pad * N_pad > (12 << 20):
        raise NotImplementedError("weight panel too large for resident-panel path")

    p = _pad2(patches.astype(jnp.bfloat16), (M_pad, K_pad))
    w = _pad2(w_folded.astype(jnp.bfloat16), (K_pad, N_pad))
    b = _pad2(bias.astype(jnp.float32), (1, N_pad))

    out_bytes = jnp.dtype(out_dtype).itemsize
    need = (2 * TM * K_pad * 2 + 2 * K_pad * N_pad * 2
            + 2 * TM * N_pad * out_bytes + 2 * N_pad * 4 + TM * N_pad * 4)
    cost = pl.CostEstimate(
        flops=2 * M * K * N, transcendentals=0,
        bytes_accessed=int(p.size * 2 + w.size * 2 + M_pad * N_pad * out_bytes))

    out = pl.pallas_call(
        _mm_bias_relu_kernel,
        out_shape=jax.ShapeDtypeStruct((M_pad, N_pad), out_dtype),
        grid_spec=pltpu.PrefetchScalarGridSpec(
            num_scalar_prefetch=0,
            grid=(M_pad // TM,),
            in_specs=[
                pl.BlockSpec((TM, K_pad), lambda i: (i, 0)),
                pl.BlockSpec((K_pad, N_pad), lambda i: (0, 0)),   # resident panel
                pl.BlockSpec((1, N_pad), lambda i: (0, 0)),
            ],
            out_specs=pl.BlockSpec((TM, N_pad), lambda i: (i, 0)),
        ),
        compiler_params=pltpu.CompilerParams(
            dimension_semantics=("parallel",),
            vmem_limit_bytes=_vmem_limit_bytes(need),
        ),
        cost_estimate=cost,
    )(p, w, b)
    return out[:M]


# --------------------------------------------------------------------------
# Kernel B: conv2 (3x3, stride 1) + bn2 + shortcut + relu, one batch element per
# grid step.  conv2 is 9 in-kernel tap matmuls over the spatially padded out1
# tile (no 9x im2col in HBM).  Shortcut is either a fused 1x1-projection tap
# matmul or an f32 elementwise residual add.
# --------------------------------------------------------------------------
def _conv3x3_bn_res_relu_kernel(x1p_ref, w_ref, b_ref, res_ref, o_ref, *, Ho, Wo):
    Cp = w_ref.shape[-1]
    acc = jnp.zeros((Ho * Wo, Cp), jnp.float32)
    for t in range(9):
        kh, kw = divmod(t, 3)
        win = x1p_ref[:, kh:kh + Ho, kw:kw + Wo, :].reshape(Ho * Wo, -1)
        acc = acc + jnp.dot(win, w_ref[t], preferred_element_type=jnp.float32)
    out = acc + b_ref[...] + res_ref[...].reshape(Ho * Wo, Cp).astype(jnp.float32)
    o_ref[...] = jnp.maximum(out, 0.0).reshape(o_ref.shape).astype(o_ref.dtype)


def _conv3x3_bn_proj_relu_kernel(x1p_ref, w_ref, b_ref, scx_ref, sw_ref, sb_ref,
                                 o_ref, *, Ho, Wo):
    Cp = w_ref.shape[-1]
    acc = jnp.zeros((Ho * Wo, Cp), jnp.float32)
    for t in range(9):
        kh, kw = divmod(t, 3)
        win = x1p_ref[:, kh:kh + Ho, kw:kw + Wo, :].reshape(Ho * Wo, -1)
        acc = acc + jnp.dot(win, w_ref[t], preferred_element_type=jnp.float32)
    sc = scx_ref[...].reshape(Ho * Wo, -1)                 # 10th tap: projection
    acc = acc + jnp.dot(sc, sw_ref[...], preferred_element_type=jnp.float32)
    out = acc + b_ref[...] + sb_ref[...]
    o_ref[...] = jnp.maximum(out, 0.0).reshape(o_ref.shape).astype(o_ref.dtype)


def _conv2_block_pallas(out1p, w2, b2, Ho, Wo, out_dtype,
                        res=None, scx=None, sw=None, sb=None):
    N, Hp, Wp, Cp = out1p.shape
    assert Hp == Ho + 2 and Wp == Wo + 2

    base_specs = [
        pl.BlockSpec((1, Hp, Wp, Cp), lambda n: (n, 0, 0, 0)),
        pl.BlockSpec((9, Cp, Cp), lambda n: (0, 0, 0)),        # resident tap panel
        pl.BlockSpec((1, Cp), lambda n: (0, 0)),
    ]
    out_bytes = jnp.dtype(out_dtype).itemsize
    need = (2 * Hp * Wp * Cp * 2 + 2 * 9 * Cp * Cp * 2 + 4 * Cp * 4
            + 2 * Ho * Wo * Cp * out_bytes + 4 * Ho * Wo * Cp * 4)
    flops = 2 * N * Ho * Wo * 9 * Cp * Cp
    byts = out1p.size * 2 + w2.size * 2 + N * Ho * Wo * Cp * out_bytes

    if scx is None:   # identity shortcut: f32 add, no matmul
        kernel = functools.partial(_conv3x3_bn_res_relu_kernel, Ho=Ho, Wo=Wo)
        in_specs = base_specs + [pl.BlockSpec((1, Ho, Wo, Cp),
                                              lambda n: (n, 0, 0, 0))]
        args = (out1p, w2, b2, res)
        need += 2 * Ho * Wo * Cp * 4
        byts += res.size * 4
    else:             # projection shortcut fused as an extra tap matmul
        Cinp = scx.shape[-1]
        kernel = functools.partial(_conv3x3_bn_proj_relu_kernel, Ho=Ho, Wo=Wo)
        in_specs = base_specs + [
            pl.BlockSpec((1, Ho, Wo, Cinp), lambda n: (n, 0, 0, 0)),
            pl.BlockSpec((Cinp, Cp), lambda n: (0, 0)),
            pl.BlockSpec((1, Cp), lambda n: (0, 0)),
        ]
        args = (out1p, w2, b2, scx, sw, sb)
        need += 2 * Ho * Wo * Cinp * 2 + 2 * Cinp * Cp * 2 + 2 * Cp * 4
        flops += 2 * N * Ho * Wo * Cinp * Cp
        byts += scx.size * 2 + sw.size * 2

    return pl.pallas_call(
        kernel,
        out_shape=jax.ShapeDtypeStruct((N, Ho, Wo, Cp), out_dtype),
        grid_spec=pltpu.PrefetchScalarGridSpec(
            num_scalar_prefetch=0,
            grid=(N,),                                         # batch -> megacore
            in_specs=in_specs,
            out_specs=pl.BlockSpec((1, Ho, Wo, Cp), lambda n: (n, 0, 0, 0)),
        ),
        compiler_params=pltpu.CompilerParams(
            dimension_semantics=("parallel",),
            vmem_limit_bytes=_vmem_limit_bytes(need),
        ),
        cost_estimate=pl.CostEstimate(flops=int(flops), transcendentals=0,
                                      bytes_accessed=int(byts)),
    )(*args)


# --------------------------------------------------------------------------
# Glue: im2col (conv1 only), weight packing, BN folding (plain JAX)
# --------------------------------------------------------------------------
def _im2col(x_nhwc, ksize, stride, pad):
    N, H, W, C = x_nhwc.shape
    Ho = (H + 2 * pad - ksize) // stride + 1
    Wo = (W + 2 * pad - ksize) // stride + 1
    xp = jnp.pad(x_nhwc, ((0, 0), (pad, pad), (pad, pad), (0, 0)))
    cols = []
    for kh in range(ksize):
        for kw in range(ksize):
            cols.append(xp[:, kh:kh + stride * Ho:stride,
                           kw:kw + stride * Wo:stride, :])
    patches = jnp.concatenate(cols, axis=-1)           # feature order (kh, kw, c)
    return patches.reshape(N * Ho * Wo, ksize * ksize * C), Ho, Wo


def _pack_conv_weight(w_oihw):
    # PyTorch (C_out, C_in, KH, KW) -> (KH*KW*C_in, C_out), matching im2col order.
    Cout, Cin, KH, KW = w_oihw.shape
    return jnp.transpose(w_oihw, (2, 3, 1, 0)).reshape(KH * KW * Cin, Cout)


def _fold_bn(gamma, beta, mean, var):
    scale = gamma / jnp.sqrt(var + EPS)
    bias = beta - mean * scale
    return scale.reshape(1, -1), bias.reshape(1, -1)


# --------------------------------------------------------------------------
# ResidualBlock forward
# --------------------------------------------------------------------------
def residual_block_forward(params, x_nchw, stride, out_dtype=jnp.float32):
    # NOTE: when chaining blocks, keep activations NHWC/bf16 between blocks and pass
    # out_dtype=jnp.bfloat16 to halve the writeback; the NCHW/f32 boundary here only
    # exists to match the nn.Module contract.
    N, Cin, H, W = x_nchw.shape
    Cout = params["conv1_w"].shape[0]
    Cp = _round_up(Cout, _LANE)
    x_nhwc = jnp.transpose(x_nchw, (0, 2, 3, 1))

    # ---- conv1 (3x3, stride) + bn1 + relu: im2col -> resident-panel matmul ----
    p1, Ho, Wo = _im2col(x_nhwc, 3, stride, 1)
    s1, b1 = _fold_bn(params["bn1_gamma"], params["bn1_beta"],
                      params["bn1_mean"], params["bn1_var"])
    w1 = _pack_conv_weight(params["conv1_w"]) * s1
    out1 = _matmul_bias_relu_pallas(p1, w1, b1, out_dtype=jnp.bfloat16)  # (M1, Cp)
    out1 = out1.reshape(N, Ho, Wo, Cp)
    # single spatial halo pad for conv2's in-kernel taps (no 9x im2col round-trip)
    out1p = jnp.pad(out1, ((0, 0), (1, 1), (1, 1), (0, 0)))

    # ---- conv2 weights with bn2 folded into a (9, Cp, Cp) tap panel ------------
    s2, b2 = _fold_bn(params["bn2_gamma"], params["bn2_beta"],
                      params["bn2_mean"], params["bn2_var"])
    w2 = jnp.transpose(params["conv2_w"], (2, 3, 1, 0)).reshape(9, Cout, Cout)
    w2 = w2 * s2.reshape(1, 1, Cout)
    w2 = jnp.pad(w2, ((0, 0), (0, Cp - Cout), (0, Cp - Cout))).astype(jnp.bfloat16)
    b2 = _pad2(b2.astype(jnp.float32), (1, Cp))

    if stride != 1 or Cin != Cout:
        # projection shortcut: strided 1x1 conv + BN, fused as a 10th tap matmul
        Cinp = _round_up(Cin, _LANE)
        scx = _pad_last(x_nhwc[:, ::stride, ::stride, :], Cinp).astype(jnp.bfloat16)
        ss, sb = _fold_bn(params["sc_gamma"], params["sc_beta"],
                          params["sc_mean"], params["sc_var"])
        sw = _pack_conv_weight(params["sc_w"]) * ss            # (Cin, Cout)
        sw = _pad2(sw.astype(jnp.bfloat16), (Cinp, Cp))
        sb = _pad2(sb.astype(jnp.float32), (1, Cp))
        out2 = _conv2_block_pallas(out1p, w2, b2, Ho, Wo, out_dtype,
                                   scx=scx, sw=sw, sb=sb)
    else:
        # identity shortcut: full-precision residual add in the kernel
        res = _pad_last(x_nhwc, Cp).astype(jnp.float32)
        out2 = _conv2_block_pallas(out1p, w2, b2, Ho, Wo, out_dtype, res=res)

    return jnp.transpose(out2[..., :Cout], (0, 3, 1, 2))       # NCHW


# --------------------------------------------------------------------------
# Deterministic parameter init (shapes from the nn.Module __init__)
# --------------------------------------------------------------------------
def init_params(key, in_c, out_c, stride):
    ks = jax.random.split(key, 10)
    p = {
        "conv1_w": 0.1 * jax.random.normal(ks[0], (out_c, in_c, 3, 3), jnp.float32),
        "bn1_gamma": 1.0 + 0.1 * jax.random.normal(ks[1], (out_c,), jnp.float32),
        "bn1_beta": 0.1 * jax.random.normal(ks[2], (out_c,), jnp.float32),
        "bn1_mean": 0.05 * jax.random.normal(ks[3], (out_c,), jnp.float32),
        "bn1_var": 1.0 + 0.1 * jax.random.uniform(ks[4], (out_c,), jnp.float32),
        "conv2_w": 0.1 * jax.random.normal(ks[5], (out_c, out_c, 3, 3), jnp.float32),
        "bn2_gamma": 1.0 + 0.1 * jax.random.normal(ks[6], (out_c,), jnp.float32),
        "bn2_beta": 0.1 * jax.random.normal(ks[7], (out_c,), jnp.float32),
        "bn2_mean": 0.05 * jax.random.normal(ks[8], (out_c,), jnp.float32),
        "bn2_var": 1.0 + 0.1 * jax.random.uniform(ks[9], (out_c,), jnp.float32),
    }
    if stride != 1 or in_c != out_c:
        ks2 = jax.random.split(jax.random.fold_in(key, 123), 5)
        p.update({
            "sc_w": 0.1 * jax.random.normal(ks2[0], (out_c, in_c, 1, 1), jnp.float32),
            "sc_gamma": 1.0 + 0.1 * jax.random.normal(ks2[1], (out_c,), jnp.float32),
            "sc_beta": 0.1 * jax.random.normal(ks2[2], (out_c,), jnp.float32),
            "sc_mean": 0.05 * jax.random.normal(ks2[3], (out_c,), jnp.float32),
            "sc_var": 1.0 + 0.1 * jax.random.uniform(ks2[4], (out_c,), jnp.float32),
        })
    return p


# --------------------------------------------------------------------------
# Pure-JAX f32 reference (correctness check only)
# --------------------------------------------------------------------------
def _ref_conv(x, w, stride, pad):
    return jax.lax.conv_general_dilated(
        x, w, (stride, stride), [(pad, pad), (pad, pad)],
        dimension_numbers=("NCHW", "OIHW", "NCHW"))


def _ref_bn(y, g, b, m, v):
    g, b, m, v = (t[None, :, None, None] for t in (g, b, m, v))
    return (y - m) / jnp.sqrt(v + EPS) * g + b


def reference_forward(params, x, stride, in_c, out_c):
    out = jax.nn.relu(_ref_bn(_ref_conv(x, params["conv1_w"], stride, 1),
                              params["bn1_gamma"], params["bn1_beta"],
                              params["bn1_mean"], params["bn1_var"]))
    out = _ref_bn(_ref_conv(out, params["conv2_w"], 1, 1),
                  params["bn2_gamma"], params["bn2_beta"],
                  params["bn2_mean"], params["bn2_var"])
    if stride != 1 or in_c != out_c:
        sc = _ref_bn(_ref_conv(x, params["sc_w"], stride, 0),
                     params["sc_gamma"], params["sc_beta"],
                     params["sc_mean"], params["sc_var"])
    else:
        sc = x
    return jax.nn.relu(out + sc)


# --------------------------------------------------------------------------
if __name__ == "__main__":
    fwd = jax.jit(residual_block_forward, static_argnums=(2,))
    key = jax.random.PRNGKey(0)
    kx, kp, kx2, kp2 = jax.random.split(key, 4)

    # Case 1: downsampling block with projection shortcut (stride 2, 4 -> 8 ch).
    in_c, out_c, stride = 4, 8, 2
    N, H, W = 2, 16, 16
    x = jax.random.normal(kx, (N, in_c, H, W), jnp.float32)
    params = init_params(kp, in_c, out_c, stride)
    out = jax.block_until_ready(fwd(params, x, stride))
    ref = jax.block_until_ready(reference_forward(params, x, stride, in_c, out_c))
    assert out.shape == (N, out_c, H // stride, W // stride), out.shape
    np.testing.assert_allclose(np.asarray(out), np.asarray(ref),
                               rtol=5e-2, atol=5e-2)

    # Case 2: identity-shortcut block (stride 1, 8 -> 8 ch).
    x2 = jax.random.normal(kx2, (N, out_c, H, W), jnp.float32)
    params2 = init_params(kp2, out_c, out_c, 1)
    out2 = jax.block_until_ready(fwd(params2, x2, 1))
    ref2 = jax.block_until_ready(reference_forward(params2, x2, 1, out_c, out_c))
    assert out2.shape == (N, out_c, H, W), out2.shape
    np.testing.assert_allclose(np.asarray(out2), np.asarray(ref2),
                               rtol=5e-2, atol=5e-2)

    print("KERNEL_OK")
</pallas_src>

<mosaic_0001>
module attributes {stable_mosaic.version = 11 : i64} {
  func.func @_mm_bias_relu_kernel(%arg0: i32, %arg1: memref<64x128xbf16, #tpu.memory_space<vmem>>, %arg2: memref<128x128xbf16, #tpu.memory_space<vmem>>, %arg3: memref<1x128xf32, #tpu.memory_space<vmem>>, %arg4: memref<64x128xbf16, #tpu.memory_space<vmem>>) attributes {dimension_semantics = [#tpu.dimension_semantics<parallel>], iteration_bounds = array<i64: 2>, scalar_prefetch = 0 : i64, scratch_operands = 0 : i64, tpu.core_type = #tpu.core_type<tc>, window_params = [{transform_indices = @transform_0, window_bounds = array<i64: 64, 128>}, {pipeline_mode = #tpu.pipeline_mode<synchronous>, transform_indices = @transform_1, window_bounds = array<i64: 128, 128>}, {pipeline_mode = #tpu.pipeline_mode<synchronous>, transform_indices = @transform_2, window_bounds = array<i64: 1, 128>}, {transform_indices = @transform_3, window_bounds = array<i64: 64, 128>}]} {
    %c0 = arith.constant 0 : index
    %c0_0 = arith.constant 0 : index
    %0 = vector.load %arg1[%c0, %c0_0] : memref<64x128xbf16, #tpu.memory_space<vmem>>, vector<64x128xbf16>
    %c0_1 = arith.constant 0 : index
    %c0_2 = arith.constant 0 : index
    %1 = vector.load %arg2[%c0_1, %c0_2] : memref<128x128xbf16, #tpu.memory_space<vmem>>, vector<128x128xbf16>
    %cst = arith.constant dense<0.000000e+00> : vector<64x128xf32>
    %2 = tpu.matmul %0, %1, %cst {dimension_numbers = #tpu.dot_dimension_numbers<[1], [0], [0], [1], [0, 0, 1, 1], [], []>} : vector<64x128xbf16>, vector<128x128xbf16>, vector<64x128xf32> -> vector<64x128xf32>
    %c0_3 = arith.constant 0 : index
    %c0_4 = arith.constant 0 : index
    %3 = vector.load %arg3[%c0_3, %c0_4] : memref<1x128xf32, #tpu.memory_space<vmem>>, vector<1x128xf32>
    %4 = vector.broadcast %3 : vector<1x128xf32> to vector<64x128xf32>
    %5 = arith.addf %2, %4 : vector<64x128xf32>
    %cst_5 = arith.constant 0.000000e+00 : f32
    %6 = vector.broadcast %cst_5 : f32 to vector<64x128xf32>
    %7 = arith.maximumf %5, %6 : vector<64x128xf32>
    %8 = arith.truncf %7 : vector<64x128xf32> to vector<64x128xbf16>
    %c0_6 = arith.constant 0 : index
    %c0_7 = arith.constant 0 : index
    %9 = vector.load %arg4[%c0_6, %c0_7] : memref<64x128xbf16, #tpu.memory_space<vmem>>, vector<64x128xbf16>
    tpu.vector_store %arg4[%c0_6, %c0_7], %8 {strides = array<i32>} : memref<64x128xbf16, #tpu.memory_space<vmem>>, vector<64x128xbf16>,
    return
  }
  func.func @transform_0(%arg0: i32) -> (i32, i32) {
    %c0_i32 = arith.constant 0 : i32
    %c0_i32_0 = arith.constant 0 : i32
    return %arg0, %c0_i32 : i32, i32
  }
  func.func @transform_1(%arg0: i32) -> (i32, i32) {
    %c0_i32 = arith.constant 0 : i32
    %c0_i32_0 = arith.constant 0 : i32
    %c0_i32_1 = arith.constant 0 : i32
    return %c0_i32, %c0_i32_0 : i32, i32
  }
  func.func @transform_2(%arg0: i32) -> (i32, i32) {
    %c0_i32 = arith.constant 0 : i32
    %c0_i32_0 = arith.constant 0 : i32
    %c0_i32_1 = arith.constant 0 : i32
    return %c0_i32, %c0_i32_0 : i32, i32
  }
  func.func @transform_3(%arg0: i32) -> (i32, i32) {
    %c0_i32 = arith.constant 0 : i32
    %c0_i32_0 = arith.constant 0 : i32
    return %arg0, %c0_i32 : i32, i32
  }
}

module attributes {stable_mosaic.version = 11 : i64} {
  func.func @_conv3x3_bn_proj_relu_kernel(%arg0: i32, %arg1: memref<1x10x10x128xbf16, #tpu.memory_space<vmem>>, %arg2: memref<9x128x128xbf16, #tpu.memory_space<vmem>>, %arg3: memref<1x128xf32, #tpu.memory_space<vmem>>, %arg4: memref<1x8x8x128xbf16, #tpu.memory_space<vmem>>, %arg5: memref<128x128xbf16, #tpu.memory_space<vmem>>, %arg6: memref<1x128xf32, #tpu.memory_space<vmem>>, %arg7: memref<1x8x8x128xf32, #tpu.memory_space<vmem>>) attributes {dimension_semantics = [#tpu.dimension_semantics<parallel>], iteration_bounds = array<i64: 2>, scalar_prefetch = 0 : i64, scratch_operands = 0 : i64, tpu.core_type = #tpu.core_type<tc>, window_params = [{transform_indices = @transform_0, window_bounds = array<i64: 1, 10, 10, 128>}, {pipeline_mode = #tpu.pipeline_mode<synchronous>, transform_indices = @transform_1, window_bounds = array<i64: 9, 128, 128>}, {pipeline_mode = #tpu.pipeline_mode<synchronous>, transform_indices = @transform_2, window_bounds = array<i64: 1, 128>}, {transform_indices = @transform_3, window_bounds = array<i64: 1, 8, 8, 128>}, {pipeline_mode = #tpu.pipeline_mode<synchronous>, transform_indices = @transform_4, window_bounds = array<i64: 128, 128>}, {pipeline_mode = #tpu.pipeline_mode<synchronous>, transform_indices = @transform_5, window_bounds = array<i64: 1, 128>}, {transform_indices = @transform_6, window_bounds = array<i64: 1, 8, 8, 128>}]} {
    %cst = arith.constant 0.000000e+00 : f32
    %0 = vector.broadcast %cst : f32 to vector<64x128xf32>
    %c0 = arith.constant 0 : index
    %c0_0 = arith.constant 0 : index
    %c0_1 = arith.constant 0 : index
    %c0_2 = arith.constant 0 : index
    %1 = vector.load %arg1[%c0, %c0_0, %c0_1, %c0_2] : memref<1x10x10x128xbf16, #tpu.memory_space<vmem>>, vector<1x8x8x128xbf16>
    %2 = vector.shape_cast %1 : vector<1x8x8x128xbf16> to vector<64x128xbf16>
    %c0_3 = arith.constant 0 : index
    %c0_4 = arith.constant 0 : index
    %c0_5 = arith.constant 0 : index
    %3 = vector.load %arg2[%c0_3, %c0_4, %c0_5] : memref<9x128x128xbf16, #tpu.memory_space<vmem>>, vector<1x128x128xbf16>
    %4 = vector.shape_cast %3 : vector<1x128x128xbf16> to vector<128x128xbf16>
    %cst_6 = arith.constant dense<0.000000e+00> : vector<64x128xf32>
    %5 = tpu.matmul %2, %4, %cst_6 {dimension_numbers = #tpu.dot_dimension_numbers<[1], [0], [0], [1], [0, 0, 1, 1], [], []>} : vector<64x128xbf16>, vector<128x128xbf16>, vector<64x128xf32> -> vector<64x128xf32>
    %6 = arith.addf %0, %5 : vector<64x128xf32>
    %c0_7 = arith.constant 0 : index
    %c0_8 = arith.constant 0 : index
    %c1 = arith.constant 1 : index
    %c0_9 = arith.constant 0 : index
    %7 = vector.load %arg1[%c0_7, %c0_8, %c1, %c0_9] : memref<1x10x10x128xbf16, #tpu.memory_space<vmem>>, vector<1x8x8x128xbf16>
    %8 = vector.shape_cast %7 : vector<1x8x8x128xbf16> to vector<64x128xbf16>
    %c1_10 = arith.constant 1 : index
    %c0_11 = arith.constant 0 : index
    %c0_12 = arith.constant 0 : index
    %9 = vector.load %arg2[%c1_10, %c0_11, %c0_12] : memref<9x128x128xbf16, #tpu.memory_space<vmem>>, vector<1x128x128xbf16>
    %10 = vector.shape_cast %9 : vector<1x128x128xbf16> to vector<128x128xbf16>
    %cst_13 = arith.constant dense<0.000000e+00> : vector<64x128xf32>
    %11 = tpu.matmul %8, %10, %cst_13 {dimension_numbers = #tpu.dot_dimension_numbers<[1], [0], [0], [1], [0, 0, 1, 1], [], []>} : vector<64x128xbf16>, vector<128x128xbf16>, vector<64x128xf32> -> vector<64x128xf32>
    %12 = arith.addf %6, %11 : vector<64x128xf32>
    %c0_14 = arith.constant 0 : index
    %c0_15 = arith.constant 0 : index
    %c2 = arith.constant 2 : index
    %c0_16 = arith.constant 0 : index
    %13 = vector.load %arg1[%c0_14, %c0_15, %c2, %c0_16] : memref<1x10x10x128xbf16, #tpu.memory_space<vmem>>, vector<1x8x8x128xbf16>
    %14 = vector.shape_cast %13 : vector<1x8x8x128xbf16> to vector<64x128xbf16>
    %c2_17 = arith.constant 2 : index
    %c0_18 = arith.constant 0 : index
    %c0_19 = arith.constant 0 : index
    %15 = vector.load %arg2[%c2_17, %c0_18, %c0_19] : memref<9x128x128xbf16, #tpu.memory_space<vmem>>, vector<1x128x128xbf16>
    %16 = vector.shape_cast %15 : vector<1x128x128xbf16> to vector<128x128xbf16>
    %cst_20 = arith.constant dense<0.000000e+00> : vector<64x128xf32>
    %17 = tpu.matmul %14, %16, %cst_20 {dimension_numbers = #tpu.dot_dimension_numbers<[1], [0], [0], [1], [0, 0, 1, 1], [], []>} : vector<64x128xbf16>, vector<128x128xbf16>, vector<64x128xf32> -> vector<64x128xf32>
    %18 = arith.addf %12, %17 : vector<64x128xf32>
    %c0_21 = arith.constant 0 : index
    %c1_22 = arith.constant 1 : index
    %c0_23 = arith.constant 0 : index
    %c0_24 = arith.constant 0 : index
    %19 = vector.load %arg1[%c0_21, %c1_22, %c0_23, %c0_24] : memref<1x10x10x128xbf16, #tpu.memory_space<vmem>>, vector<1x8x8x128xbf16>
    %20 = vector.shape_cast %19 : vector<1x8x8x128xbf16> to vector<64x128xbf16>
    %c3 = arith.constant 3 : index
    %c0_25 = arith.constant 0 : index
    %c0_26 = arith.constant 0 : index
    %21 = vector.load %arg2[%c3, %c0_25, %c0_26] : memref<9x128x128xbf16, #tpu.memory_space<vmem>>, vector<1x128x128xbf16>
    %22 = vector.shape_cast %21 : vector<1x128x128xbf16> to vector<128x128xbf16>
    %cst_27 = arith.constant dense<0.000000e+00> : vector<64x128xf32>
    %23 = tpu.matmul %20, %22, %cst_27 {dimension_numbers = #tpu.dot_dimension_numbers<[1], [0], [0], [1], [0, 0, 1, 1], [], []>} : vector<64x128xbf16>, vector<128x128xbf16>, vector<64x128xf32> -> vector<64x128xf32>
    %24 = arith.addf %18, %23 : vector<64x128xf32>
    %c0_28 = arith.constant 0 : index
    %c1_29 = arith.constant 1 : index
    %c1_30 = arith.constant 1 : index
    %c0_31 = arith.constant 0 : index
    %25 = vector.load %arg1[%c0_28, %c1_29, %c1_30, %c0_31] : memref<1x10x10x128xbf16, #tpu.memory_space<vmem>>, vector<1x8x8x128xbf16>
    %26 = vector.shape_cast %25 : vector<1x8x8x128xbf16> to vector<64x128xbf16>
    %c4 = arith.constant 4 : index
    %c0_32 = arith.constant 0 : index
    %c0_33 = arith.constant 0 : index
    %27 = vector.load %arg2[%c4, %c0_32, %c0_33] : memref<9x128x128xbf16, #tpu.memory_space<vmem>>, vector<1x128x128xbf16>
    %28 = vector.shape_cast %27 : vector<1x128x128xbf16> to vector<128x128xbf16>
    %cst_34 = arith.constant dense<0.000000e+00> : vector<64x128xf32>
    %29 = tpu.matmul %26, %28, %cst_34 {dimension_numbers = #tpu.dot_dimension_numbers<[1], [0], [0], [1], [0, 0, 1, 1], [], []>} : vector<64x128xbf16>, vector<128x128xbf16>, vector<64x128xf32> -> vector<64x128xf32>
    %30 = arith.addf %24, %29 : vector<64x128xf32>
    %c0_35 = arith.constant 0 : index
    %c1_36 = arith.constant 1 : index
    %c2_37 = arith.constant 2 : index
    %c0_38 = arith.constant 0 : index
    %31 = vector.load %arg1[%c0_35, %c1_36, %c2_37, %c0_38] : memref<1x10x10x128xbf16, #tpu.memory_space<vmem>>, vector<1x8x8x128xbf16>
    %32 = vector.shape_cast %31 : vector<1x8x8x128xbf16> to vector<64x128xbf16>
    %c5 = arith.constant 5 : index
    %c0_39 = arith.constant 0 : index
    %c0_40 = arith.constant 0 : index
    %33 = vector.load %arg2[%c5, %c0_39, %c0_40] : memref<9x128x128xbf16, #tpu.memory_space<vmem>>, vector<1x128x128xbf16>
    %34 = vector.shape_cast %33 : vector<1x128x128xbf16> to vector<128x128xbf16>
    %cst_41 = arith.constant dense<0.000000e+00> : vector<64x128xf32>
    %35 = tpu.matmul %32, %34, %cst_41 {dimension_numbers = #tpu.dot_dimension_numbers<[1], [0], [0], [1], [0, 0, 1, 1], [], []>} : vector<64x128xbf16>, vector<128x128xbf16>, vector<64x128xf32> -> vector<64x128xf32>
    %36 = arith.addf %30, %35 : vector<64x128xf32>
    %c0_42 = arith.constant 0 : index
    %c2_43 = arith.constant 2 : index
    %c0_44 = arith.constant 0 : index
    %c0_45 = arith.constant 0 : index
    %37 = vector.load %arg1[%c0_42, %c2_43, %c0_44, %c0_45] : memref<1x10x10x128xbf16, #tpu.memory_space<vmem>>, vector<1x8x8x128xbf16>
    %38 = vector.shape_cast %37 : vector<1x8x8x128xbf16> to vector<64x128xbf16>
    %c6 = arith.constant 6 : index
    %c0_46 = arith.constant 0 : index
    %c0_47 = arith.constant 0 : index
    %39 = vector.load %arg2[%c6, %c0_46, %c0_47] : memref<9x128x128xbf16, #tpu.memory_space<vmem>>, vector<1x128x128xbf16>
    %40 = vector.shape_cast %39 : vector<1x128x128xbf16> to vector<128x128xbf16>
    %cst_48 = arith.constant dense<0.000000e+00> : vector<64x128xf32>
    %41 = tpu.matmul %38, %40, %cst_48 {dimension_numbers = #tpu.dot_dimension_numbers<[1], [0], [0], [1], [0, 0, 1, 1], [], []>} : vector<64x128xbf16>, vector<128x128xbf16>, vector<64x128xf32> -> vector<64x128xf32>
    %42 = arith.addf %36, %41 : vector<64x128xf32>
    %c0_49 = arith.constant 0 : index
    %c2_50 = arith.constant 2 : index
    %c1_51 = arith.constant 1 : index
    %c0_52 = arith.constant 0 : index
    %43 = vector.load %arg1[%c0_49, %c2_50, %c1_51, %c0_52] : memref<1x10x10x128xbf16, #tpu.memory_space<vmem>>, vector<1x8x8x128xbf16>
    %44 = vector.shape_cast %43 : vector<1x8x8x128xbf16> to vector<64x128xbf16>
    %c7 = arith.constant 7 : index
    %c0_53 = arith.constant 0 : index
    %c0_54 = arith.constant 0 : index
    %45 = vector.load %arg2[%c7, %c0_53, %c0_54] : memref<9x128x128xbf16, #tpu.memory_space<vmem>>, vector<1x128x128xbf16>
    %46 = vector.shape_cast %45 : vector<1x128x128xbf16> to vector<128x128xbf16>
    %cst_55 = arith.constant dense<0.000000e+00> : vector<64x128xf32>
    %47 = tpu.matmul %44, %46, %cst_55 {dimension_numbers = #tpu.dot_dimension_numbers<[1], [0], [0], [1], [0, 0, 1, 1], [], []>} : vector<64x128xbf16>, vector<128x128xbf16>, vector<64x128xf32> -> vector<64x128xf32>
    %48 = arith.addf %42, %47 : vector<64x128xf32>
    %c0_56 = arith.constant 0 : index
    %c2_57 = arith.constant 2 : index
    %c2_58 = arith.constant 2 : index
    %c0_59 = arith.constant 0 : index
    %49 = vector.load %arg1[%c0_56, %c2_57, %c2_58, %c0_59] : memref<1x10x10x128xbf16, #tpu.memory_space<vmem>>, vector<1x8x8x128xbf16>
    %50 = vector.shape_cast %49 : vector<1x8x8x128xbf16> to vector<64x128xbf16>
    %c8 = arith.constant 8 : index
    %c0_60 = arith.constant 0 : index
    %c0_61 = arith.constant 0 : index
    %51 = vector.load %arg2[%c8, %c0_60, %c0_61] : memref<9x128x128xbf16, #tpu.memory_space<vmem>>, vector<1x128x128xbf16>
    %52 = vector.shape_cast %51 : vector<1x128x128xbf16> to vector<128x128xbf16>
    %cst_62 = arith.constant dense<0.000000e+00> : vector<64x128xf32>
    %53 = tpu.matmul %50, %52, %cst_62 {dimension_numbers = #tpu.dot_dimension_numbers<[1], [0], [0], [1], [0, 0, 1, 1], [], []>} : vector<64x128xbf16>, vector<128x128xbf16>, vector<64x128xf32> -> vector<64x128xf32>
    %54 = arith.addf %48, %53 : vector<64x128xf32>
    %c0_63 = arith.constant 0 : index
    %c0_64 = arith.constant 0 : index
    %c0_65 = arith.constant 0 : index
    %c0_66 = arith.constant 0 : index
    %55 = vector.load %arg4[%c0_63, %c0_64, %c0_65, %c0_66] : memref<1x8x8x128xbf16, #tpu.memory_space<vmem>>, vector<1x8x8x128xbf16>
    %56 = vector.shape_cast %55 : vector<1x8x8x128xbf16> to vector<64x128xbf16>
    %c0_67 = arith.constant 0 : index
    %c0_68 = arith.constant 0 : index
    %57 = vector.load %arg5[%c0_67, %c0_68] : memref<128x128xbf16, #tpu.memory_space<vmem>>, vector<128x128xbf16>
    %cst_69 = arith.constant dense<0.000000e+00> : vector<64x128xf32>
    %58 = tpu.matmul %56, %57, %cst_69 {dimension_numbers = #tpu.dot_dimension_numbers<[1], [0], [0], [1], [0, 0, 1, 1], [], []>} : vector<64x128xbf16>, vector<128x128xbf16>, vector<64x128xf32> -> vector<64x128xf32>
    %59 = arith.addf %54, %58 : vector<64x128xf32>
    %c0_70 = arith.constant 0 : index
    %c0_71 = arith.constant 0 : index
    %60 = vector.load %arg3[%c0_70, %c0_71] : memref<1x128xf32, #tpu.memory_space<vmem>>, vector<1x128xf32>
    %61 = vector.broadcast %60 : vector<1x128xf32> to vector<64x128xf32>
    %62 = arith.addf %59, %61 : vector<64x128xf32>
    %c0_72 = arith.constant 0 : index
    %c0_73 = arith.constant 0 : index
    %63 = vector.load %arg6[%c0_72, %c0_73] : memref<1x128xf32, #tpu.memory_space<vmem>>, vector<1x128xf32>
    %64 = vector.broadcast %63 : vector<1x128xf32> to vector<64x128xf32>
    %65 = arith.addf %62, %64 : vector<64x128xf32>
    %cst_74 = arith.constant 0.000000e+00 : f32
    %66 = vector.broadcast %cst_74 : f32 to vector<64x128xf32>
    %67 = arith.maximumf %65, %66 : vector<64x128xf32>
    %68 = vector.shape_cast %67 : vector<64x128xf32> to vector<1x8x8x128xf32>
    %c0_75 = arith.constant 0 : index
    %c0_76 = arith.constant 0 : index
    %c0_77 = arith.constant 0 : index
    %c0_78 = arith.constant 0 : index
    %69 = vector.load %arg7[%c0_75, %c0_76, %c0_77, %c0_78] : memref<1x8x8x128xf32, #tpu.memory_space<vmem>>, vector<1x8x8x128xf32>
    tpu.vector_store %arg7[%c0_75, %c0_76, %c0_77, %c0_78], %68 {strides = array<i32>} : memref<1x8x8x128xf32, #tpu.memory_space<vmem>>, vector<1x8x8x128xf32>,
    return
  }
  func.func @transform_0(%arg0: i32) -> (i32, i32, i32, i32) {
    %c0_i32 = arith.constant 0 : i32
    %c0_i32_0 = arith.constant 0 : i32
    %c0_i32_1 = arith.constant 0 : i32
    %c0_i32_2 = arith.constant 0 : i32
    return %arg0, %c0_i32, %c0_i32_0, %c0_i32_1 : i32, i32, i32, i32
  }
  func.func @transform_1(%arg0: i32) -> (i32, i32, i32) {
    %c0_i32 = arith.constant 0 : i32
    %c0_i32_0 = arith.constant 0 : i32
    %c0_i32_1 = arith.constant 0 : i32
    %c0_i32_2 = arith.constant 0 : i32
    return %c0_i32, %c0_i32_0, %c0_i32_1 : i32, i32, i32
  }
  func.func @transform_2(%arg0: i32) -> (i32, i32) {
    %c0_i32 = arith.constant 0 : i32
    %c0_i32_0 = arith.constant 0 : i32
    %c0_i32_1 = arith.constant 0 : i32
    return %c0_i32, %c0_i32_0 : i32, i32
  }
  func.func @transform_3(%arg0: i32) -> (i32, i32, i32, i32) {
    %c0_i32 = arith.constant 0 : i32
    %c0_i32_0 = arith.constant 0 : i32
    %c0_i32_1 = arith.constant 0 : i32
    %c0_i32_2 = arith.constant 0 : i32
    return %arg0, %c0_i32, %c0_i32_0, %c0_i32_1 : i32, i32, i32, i32
  }
  func.func @transform_4(%arg0: i32) -> (i32, i32) {
    %c0_i32 = arith.constant 0 : i32
    %c0_i32_0 = arith.constant 0 : i32
    %c0_i32_1 = arith.constant 0 : i32
    return %c0_i32, %c0_i32_0 : i32, i32
  }
  func.func @transform_5(%arg0: i32) -> (i32, i32) {
    %c0_i32 = arith.constant 0 : i32
    %c0_i32_0 = arith.constant 0 : i32
    %c0_i32_1 = arith.constant 0 : i32
    return %c0_i32, %c0_i32_0 : i32, i32
  }
  func.func @transform_6(%arg0: i32) -> (i32, i32, i32, i32) {
    %c0_i32 = arith.constant 0 : i32
    %c0_i32_0 = arith.constant 0 : i32
    %c0_i32_1 = arith.constant 0 : i32
    %c0_i32_2 = arith.constant 0 : i32
    return %arg0, %c0_i32, %c0_i32_0, %c0_i32_1 : i32, i32, i32, i32
  }
}

</mosaic_0001>

<llo_original>
// kernel: residual_block_forward.2
$region0: #{residual_block_forward.2}
  #allocation0 [shape = 'u32[]', space=smem, size = 0x4, offset = 0x4, fixed_abs, tag = 'smem constant byte address 0x4 - core index']
  #allocation1 [shape = 'u32[144,128]{1,0:T(1,128)}', space=vmem, size = 0x12000, scoped, tag = 'internal scratch']
  %s0 = inlined_call_operand.vmem [shape: bf16[128,128], index: 0, kind: input, shape index: {}]
  %s1 = inlined_call_operand.vmem [shape: bf16[128,128], index: 1, kind: input, shape index: {}]
  %s2 = inlined_call_operand.vmem [shape: f32[1,128], index: 2, kind: input, shape index: {}]
  %s3 = inlined_call_operand.vmem [shape: bf16[128,128], index: 3, kind: output, shape index: {}]
  %s4 = sld [smem:[#allocation0]]
  $region45: #{residual_block_forward.2} parent=0
    _
  %s6 = ssub.s32 1, %s4
  %s7 = scalar_select 0, %s6, %s4
  loop: start=0, step=1, limit=4
  $region2: #{residual_block_forward.2} parent=0 // loop_pre_header
    _
  $region3: #{residual_block_forward.2} parent=0 // loop_header
    %s9 = sphi 0, %s13
    %p10 = scmp.ge.s32.totalorder %s9, 4
    %s19 = sphi 0, %s21
    %s22 = sphi 0, %s19
    %s23 = sphi 0, %s22
    %s39 = sphi 0, %s23
    %s43 = sphi 0, %s43
    %s45 = sphi 0, %s43
    %s46 = sphi 0, %s45
    %s60 = sphi 0, %s46
    %s64 = sphi 0, %s64
    %s66 = sphi 0, %s64
    %s67 = sphi 0, %s66
    %s81 = sphi 0, %s67
    %s87 = sphi 0, %s89
    %s90 = sphi 0, %s87
    %s91 = sphi 0, %s90
    %s107 = sphi 0, %s91
  $region4: #{residual_block_forward.2} parent=0 // loop_header_branch
    %12 = sbr.rel (%p10) target = $region8
  $region5: #{residual_block_forward.2} parent=0 // loop_body
    %s14 = ssub.s32 %s9, 1
    %s15 = ssub.s32 %s9, 2
    %s16 = sadd.s32 %s9, 1
    %s17 = ssub.s32 %s9, %s16
    %p18 = scmp.eq.s32.totalorder %s17, 0
    %s20 = sadd.s32 %s19, 1
    %s21 = scalar_select %p18, %s19, %s20
    %p24 = pneg %p18
    %p25 = scmp.eq.s32.totalorder %s9, 1
    %p26 = por %p24, %p25
    %p27 = scmp.ne.s32.totalorder %s19, %s22
    %p28 = scmp.eq.s32.totalorder %s9, 0
    %p29 = por %p27, %p28
    %p30 = scmp.ne.s32.totalorder %s19, %s22
    %p31 = scmp.eq.s32.totalorder %s14, 1
    %p32 = por %p30, %p31
    %p33 = scmp.ne.s32.totalorder %s22, %s23
    %p34 = scmp.eq.s32.totalorder %s14, 0
    %p35 = por %p33, %p34
    %p36 = scmp.ne.s32.totalorder %s22, %s23
    %p37 = scmp.eq.s32.totalorder %s15, 1
    %p38 = por %p36, %p37
    %p40 = scmp.ne.s32.totalorder %s23, %s39
    %p41 = scmp.eq.s32.totalorder %s15, 0
    %p42 = por %p40, %p41
    %s44 = sadd.s32 %s43, 1
    %p47 = scmp.eq.s32.totalorder %s9, 1
    %p48 = scmp.ne.s32.totalorder %s43, %s45
    %p49 = scmp.eq.s32.totalorder %s9, 0
    %p50 = por %p48, %p49
    %p51 = scmp.ne.s32.totalorder %s43, %s45
    %p52 = scmp.eq.s32.totalorder %s14, 1
    %p53 = por %p51, %p52
    %p54 = scmp.ne.s32.totalorder %s45, %s46
    %p55 = scmp.eq.s32.totalorder %s14, 0
    %p56 = por %p54, %p55
    %p57 = scmp.ne.s32.totalorder %s45, %s46
    %p58 = scmp.eq.s32.totalorder %s15, 1
    %p59 = por %p57, %p58
    %p61 = scmp.ne.s32.totalorder %s46, %s60
    %p62 = scmp.eq.s32.totalorder %s15, 0
    %p63 = por %p61, %p62
    %s65 = sadd.s32 %s64, 1
    %p68 = scmp.eq.s32.totalorder %s9, 1
    %p69 = scmp.ne.s32.totalorder %s64, %s66
    %p70 = scmp.eq.s32.totalorder %s9, 0
    %p71 = por %p69, %p70
    %p72 = scmp.ne.s32.totalorder %s64, %s66
    %p73 = scmp.eq.s32.totalorder %s14, 1
    %p74 = por %p72, %p73
    %p75 = scmp.ne.s32.totalorder %s66, %s67
    %p76 = scmp.eq.s32.totalorder %s14, 0
    %p77 = por %p75, %p76
    %p78 = scmp.ne.s32.totalorder %s66, %s67
    %p79 = scmp.eq.s32.totalorder %s15, 1
    %p80 = por %p78, %p79
    %p82 = scmp.ne.s32.totalorder %s67, %s81
    %p83 = scmp.eq.s32.totalorder %s15, 0
    %p84 = por %p82, %p83
    %s85 = ssub.s32 %s9, %s16
    %p86 = scmp.eq.s32.totalorder %s85, 0
    %s88 = sadd.s32 %s87, 1
    %s89 = scalar_select %p86, %s87, %s88
    %p92 = pneg %p86
    %p93 = scmp.eq.s32.totalorder %s9, 1
    %p94 = por %p92, %p93
    %p95 = scmp.ne.s32.totalorder %s87, %s90
    %p96 = scmp.eq.s32.totalorder %s9, 0
    %p97 = por %p95, %p96
    %p98 = scmp.ne.s32.totalorder %s87, %s90
    %p99 = scmp.eq.s32.totalorder %s14, 1
    %p100 = por %p98, %p99
    %p101 = scmp.ne.s32.totalorder %s90, %s91
    %p102 = scmp.eq.s32.totalorder %s14, 0
    %p103 = por %p101, %p102
    %p104 = scmp.ne.s32.totalorder %s90, %s91
    %p105 = scmp.eq.s32.totalorder %s15, 1
    %p106 = por %p104, %p105
    %p108 = scmp.ne.s32.totalorder %s91, %s107
    %p109 = scmp.eq.s32.totalorder %s15, 0
    %p110 = por %p108, %p109
    %p111 = scmp.le.s32.totalorder 1, %s9
    %p112 = scmp.lt.s32.totalorder %s9, 3
    %p113 = pnand %p111, %p112
    %p114 = pneg %p113
    // Predicated region
    $region9: #{residual_block_forward.2} parent=5 // pred_check
      _
    $region10: #{residual_block_forward.2} parent=5 // pred_check_branch
      %116 = sbr.rel (%p113) target = $region12
    $region11: #{residual_block_forward.2} parent=5 // pred_region
      %s117 = ssub.s32 %s9, 1
      // Predicated region
      $region13: #{residual_block_forward.2} parent=11 // pred_check
        %p118 = pneg %p56
      $region14: #{residual_block_forward.2} parent=11 // pred_check_branch
        %120 = sbr.rel (%p118) target = $region16
      $region15: #{residual_block_forward.2} parent=11 // pred_region
        _
      $region16: #{residual_block_forward.2} parent=11 // pred_fallthru
        _
      // Predicated region
      $region17: #{residual_block_forward.2} parent=11 // pred_check
        %p121 = pneg %p77
      $region18: #{residual_block_forward.2} parent=11 // pred_check_branch
        %123 = sbr.rel (%p121) target = $region20
      $region19: #{residual_block_forward.2} parent=11 // pred_region
        _
      $region20: #{residual_block_forward.2} parent=11 // pred_fallthru
        _
    $region12: #{residual_block_forward.2} parent=5 // pred_fallthru
      _
    %p124 = scmp.lt.s32.totalorder %s9, 2
    // Predicated region
    $region21: #{residual_block_forward.2} parent=5 // pred_check
      %p125 = pneg %p124
    $region22: #{residual_block_forward.2} parent=5 // pred_check_branch
      %127 = sbr.rel (%p125) target = $region24
    $region23: #{residual_block_forward.2} parent=5 // pred_region
      // Predicated region
      $region25: #{residual_block_forward.2} parent=23 // pred_check
        %p128 = pneg %p29
      $region26: #{residual_block_forward.2} parent=23 // pred_check_branch
        %130 = sbr.rel (%p128) target = $region28
      $region27: #{residual_block_forward.2} parent=23 // pred_region
        %s131 = smul.u32 8, %s9
        %p132 = scmp.lt.s32.totalorder %s131, 15
        %s133 = scalar_select %p132, %s131, 15
        %s134 = smul.addr %s133, 4
        %s135 = scalar_lea.vmem %s0, %s134
        %s136 = smul.u32 8, %s9
      $region28: #{residual_block_forward.2} parent=23 // pred_fallthru
        _
    $region24: #{residual_block_forward.2} parent=5 // pred_fallthru
      _
    %p137 = scmp.le.s32.totalorder 1, %s9
    %p138 = scmp.lt.s32.totalorder %s9, 3
    %p139 = pnand %p137, %p138
    %p140 = pneg %p139
    // Predicated region
    $region29: #{residual_block_forward.2} parent=5 // pred_check
      _
    $region30: #{residual_block_forward.2} parent=5 // pred_check_branch
      %142 = sbr.rel (%p139) target = $region32
    $region31: #{residual_block_forward.2} parent=5 // pred_region
      %s143 = ssub.s32 %s9, 1
      %s144 = smul.u32 8, %s14
      %p145 = scmp.lt.s32.totalorder %s144, 15
      %s146 = scalar_select %p145, %s144, 15
      %s147 = smul.addr %s146, 4
      %s148 = scalar_lea.vmem %s0, %s147
      %p149 = pneg %p35
      %p150 = pneg %p32
      %p151 = pneg %p56
      %p152 = pneg %p53
      %p153 = pneg %p77
      %p154 = pneg %p74
      %p155 = pneg %p103
      %p156 = pneg %p100
      %s157 = smul.u32 8, %s14
      %p158 = scmp.lt.s32.totalorder %s157, 15
      %s159 = scalar_select %p158, %s157, 15
      %s160 = smul.addr %s159, 4
      %s161 = scalar_lea.vmem %s3, %s160
      %s162 = smul.u32 8, %s14
      %p163 = scmp.lt.s32.totalorder %s162, 15
      %s164 = scalar_select %p163, %s162, 15
      %s165 = smul.addr %s164, 4
      %s166 = scalar_lea.vmem %s0, %s165
      %s167 = smul.u32 8, %s14
      %s168 = smul.u32 8, %s14
      %p169 = scmp.lt.s32.totalorder %s168, 15
      %s170 = scalar_select %p169, %s168, 15
      %s171 = smul.addr %s170, 4
      %s172 = scalar_lea.vmem %s3, %s171
      %s173 = smul.u32 8, %s14
      %v175 = vld [vmem:[%s166] sm:$0xf]
      %v176 = vld [vmem:[%s166 + $0x4] sm:$0xf]
      %v177 = vld [vmem:[%s166 + $0x8] sm:$0xf]
      %v178 = vld [vmem:[%s166 + $0xc] sm:$0xf]
      %v179 = vld [vmem:[%s166 + $0x10] sm:$0xf]
      %v180 = vld [vmem:[%s166 + $0x14] sm:$0xf]
      %v181 = vld [vmem:[%s166 + $0x18] sm:$0xf]
      %v182 = vld [vmem:[%s166 + $0x1c] sm:$0xf]
      %v183 = vld [vmem:[%s1] sm:$0xf]
      %v184 = vld [vmem:[%s1 + $0x4] sm:$0xf]
      %v185 = vld [vmem:[%s1 + $0x8] sm:$0xf]
      %v186 = vld [vmem:[%s1 + $0xc] sm:$0xf]
      %v187 = vld [vmem:[%s1 + $0x10] sm:$0xf]
      %v188 = vld [vmem:[%s1 + $0x14] sm:$0xf]
      %v189 = vld [vmem:[%s1 + $0x18] sm:$0xf]
      %v190 = vld [vmem:[%s1 + $0x1c] sm:$0xf]
      %v191 = vld [vmem:[%s1 + $0x20] sm:$0xf]
      %v192 = vld [vmem:[%s1 + $0x24] sm:$0xf]
      %v193 = vld [vmem:[%s1 + $0x28] sm:$0xf]
      %v194 = vld [vmem:[%s1 + $0x2c] sm:$0xf]
      %v195 = vld [vmem:[%s1 + $0x30] sm:$0xf]
      %v196 = vld [vmem:[%s1 + $0x34] sm:$0xf]
      %v197 = vld [vmem:[%s1 + $0x38] sm:$0xf]
      %v198 = vld [vmem:[%s1 + $0x3c] sm:$0xf]
      %v199 = vld [vmem:[%s2] sm:$0x1]
      %v201 = vlaneseq
      %v202 = vshrl.u32 %v201, 7
      %v203 = vsub.s32 0, %v202
      %v204 = vrot.slane %v199, %v203
      %v214 = vunpack.c.l.b16 %v175
      %v215 = vunpack.c.l.b16 %v176
      %v216 = vunpack.c.l.b16 %v177
      %v217 = vunpack.c.l.b16 %v178
      %v218 = vunpack.c.l.b16 %v179
      %v219 = vunpack.c.l.b16 %v180
      %v220 = vunpack.c.l.b16 %v181
      %v221 = vunpack.c.l.b16 %v182
      %v222 = vpack.c.b16 %v215, %v214
      %v223 = vpack.c.b16 %v217, %v216
      %v224 = vpack.c.b16 %v219, %v218
      %v225 = vpack.c.b16 %v221, %v220
      %v246 = vunpack.c.l.b16 %v183
      %v247 = vunpack.c.l.b16 %v184
      %v248 = vunpack.c.l.b16 %v185
      %v249 = vunpack.c.l.b16 %v186
      %v250 = vunpack.c.l.b16 %v187
      %v251 = vunpack.c.l.b16 %v188
      %v252 = vunpack.c.l.b16 %v189
      %v253 = vunpack.c.l.b16 %v190
      %v254 = vunpack.c.l.b16 %v191
      %v255 = vunpack.c.l.b16 %v192
      %v256 = vunpack.c.l.b16 %v193
      %v257 = vunpack.c.l.b16 %v194
      %v258 = vunpack.c.l.b16 %v195
      %v259 = vunpack.c.l.b16 %v196
      %v260 = vunpack.c.l.b16 %v197
      %v261 = vunpack.c.l.b16 %v198
      %v262 = vpack.c.b16 %v247, %v246
      %v263 = vpack.c.b16 %v249, %v248
      %v264 = vpack.c.b16 %v251, %v250
      %v265 = vpack.c.b16 %v253, %v252
      %v266 = vpack.c.b16 %v255, %v254
      %v267 = vpack.c.b16 %v257, %v256
      %v268 = vpack.c.b16 %v259, %v258
      %v269 = vpack.c.b16 %v261, %v260
      %278 = vmatprep.subr.bf16.mxu0 0
      %279 = vmatpush1.bf16.msra.mxu0 %v269
      %280 = vmatprep.subr.bf16.mxu0 0
      %281 = vmatpush1.bf16.msra.mxu0 %v268
      %282 = vmatprep.subr.bf16.mxu0 0
      %283 = vmatpush1.bf16.msra.mxu0 %v267
      %284 = vmatprep.subr.bf16.mxu0 0
      %285 = vmatpush1.bf16.msra.mxu0 %v266
      %286 = vmatprep.subr.bf16.mxu0 0
      %287 = vmatpush1.bf16.msra.mxu0 %v265
      %288 = vmatprep.subr.bf16.mxu0 0
      %289 = vmatpush1.bf16.msra.mxu0 %v264
      %290 = vmatprep.subr.bf16.mxu0 0
      %291 = vmatpush1.bf16.msra.mxu0 %v263
      %292 = vmatprep.subr.bf16.mxu0 0
      %293 = vmatpush1.bf16.msra.mxu0 %v262
      %294 = vmatprep.subr.bf16.mxu0 0
      %295 = vmatpush2.bf16.msra.mxu0 0
      %296 = vmatprep.subr.bf16.mxu0 0
      %297 = vmatpush2.bf16.msra.mxu0 0
      %298 = vmatprep.subr.bf16.mxu0 0
      %299 = vmatpush2.bf16.msra.mxu0 0
      %300 = vmatprep.subr.bf16.mxu0 0
      %301 = vmatpush2.bf16.msra.mxu0 0
      %302 = vmatprep.subr.bf16.mxu0 0
      %303 = vmatpush2.bf16.msra.mxu0 0
      %304 = vmatprep.subr.bf16.mxu0 0
      %305 = vmatpush2.bf16.msra.mxu0 0
      %306 = vmatprep.subr.bf16.mxu0 0
      %307 = vmatpush2.bf16.msra.mxu0 0
      %308 = vmatprep.subr.bf16.mxu0 0
      %309 = vmatpush2.bf16.msra.mxu0 0
      %310 = vmatprep.mubr.bf16.mxu0 0
      %311 = vmatmul.mubr.bf16.gmra.mxu0 %v222
      %v312 = vpop.f32.mrf.mxu0
      %v313 = vadd.f32 %v204, %v312
      %v314 = vpop.f32.mrf.mxu0
      %v315 = vpop.f32.mrf.mxu0
      %v316 = vadd.f32 %v204, %v315
      %v317 = vpop.f32.mrf.mxu0
      %318 = vmatprep.mubr.bf16.mxu0 0
      %319 = vmatmul.mubr.bf16.gmra.mxu0 %v223
      %v320 = vpop.f32.mrf.mxu0
      %v321 = vadd.f32 %v204, %v320
      %v322 = vpop.f32.mrf.mxu0
      %v323 = vpop.f32.mrf.mxu0
      %v324 = vadd.f32 %v204, %v323
      %v325 = vpop.f32.mrf.mxu0
      %326 = vmatprep.mubr.bf16.mxu0 0
      %327 = vmatmul.mubr.bf16.gmra.mxu0 %v224
      %v328 = vpop.f32.mrf.mxu0
      %v329 = vadd.f32 %v204, %v328
      %v330 = vpop.f32.mrf.mxu0
      %v331 = vpop.f32.mrf.mxu0
      %v332 = vadd.f32 %v204, %v331
      %v333 = vpop.f32.mrf.mxu0
      %334 = vmatprep.mubr.bf16.mxu0 0
      %335 = vmatmul.mubr.bf16.gmra.mxu0 %v225
      %v336 = vpop.f32.mrf.mxu0
      %v337 = vadd.f32 %v204, %v336
      %v338 = vpop.f32.mrf.mxu0
      %v339 = vpop.f32.mrf.mxu0
      %v340 = vadd.f32 %v204, %v339
      %v341 = vpop.f32.mrf.mxu0
      %342 = vdwg.mxu0
      %v343 = vmax.f32 %v313, 0.0
      %v344 = vmax.f32 %v316, 0.0
      %v345 = vmax.f32 %v321, 0.0
      %v346 = vmax.f32 %v324, 0.0
      %v347 = vmax.f32 %v329, 0.0
      %v348 = vmax.f32 %v332, 0.0
      %v349 = vmax.f32 %v337, 0.0
      %v350 = vmax.f32 %v340, 0.0
      %v351 = vpack.c.bf16 %v344, %v343
      %v352 = vpack.c.bf16 %v346, %v345
      %v353 = vpack.c.bf16 %v348, %v347
      %v354 = vpack.c.bf16 %v350, %v349
      %v359 = vunpack.c.l.b16 %v351
      %v360 = vunpack.c.h.b16 %v351
      %v361 = vunpack.c.l.b16 %v352
      %v362 = vunpack.c.h.b16 %v352
      %v363 = vunpack.c.l.b16 %v353
      %v364 = vunpack.c.h.b16 %v353
      %v365 = vunpack.c.l.b16 %v354
      %v366 = vunpack.c.h.b16 %v354
      %v367 = vpack.c.b16 %v359, %v359
      %v368 = vpack.c.b16 %v360, %v360
      %v369 = vpack.c.b16 %v361, %v361
      %v370 = vpack.c.b16 %v362, %v362
      %v371 = vpack.c.b16 %v363, %v363
      %v372 = vpack.c.b16 %v364, %v364
      %v373 = vpack.c.b16 %v365, %v365
      %v374 = vpack.c.b16 %v366, %v366
      %383 = vst [vmem:[%s172] sm:$0xf] %v367
      %384 = vst [vmem:[%s172 + $0x4] sm:$0xf] %v368
      %385 = vst [vmem:[%s172 + $0x8] sm:$0xf] %v369
      %386 = vst [vmem:[%s172 + $0xc] sm:$0xf] %v370
      %387 = vst [vmem:[%s172 + $0x10] sm:$0xf] %v371
      %388 = vst [vmem:[%s172 + $0x14] sm:$0xf] %v372
      %389 = vst [vmem:[%s172 + $0x18] sm:$0xf] %v373
      %390 = vst [vmem:[%s172 + $0x1c] sm:$0xf] %v374
      %s391 = smul.u32 8, %s14
      %p392 = scmp.lt.s32.totalorder %s391, 15
      %s393 = scalar_select %p392, %s391, 15
      %s394 = smul.addr %s393, 4
      %s395 = scalar_lea.vmem %s3, %s394
      // Predicated region
      $region33: #{residual_block_forward.2} parent=31 // pred_check
        %p396 = pneg %p100
      $region34: #{residual_block_forward.2} parent=31 // pred_check_branch
        %398 = sbr.rel (%p396) target = $region36
      $region35: #{residual_block_forward.2} parent=31 // pred_region
        %s399 = smul.u32 8, %s14
      $region36: #{residual_block_forward.2} parent=31 // pred_fallthru
        _
    $region32: #{residual_block_forward.2} parent=5 // pred_fallthru
      _
    %p400 = scmp.le.s32.totalorder 2, %s9
    // Predicated region
    $region37: #{residual_block_forward.2} parent=5 // pred_check
      %p401 = pneg %p400
    $region38: #{residual_block_forward.2} parent=5 // pred_check_branch
      %403 = sbr.rel (%p401) target = $region40
    $region39: #{residual_block_forward.2} parent=5 // pred_region
      %s404 = ssub.s32 %s9, 2
      // Predicated region
      $region41: #{residual_block_forward.2} parent=39 // pred_check
        %p405 = pneg %p106
      $region42: #{residual_block_forward.2} parent=39 // pred_check_branch
        %407 = sbr.rel (%p405) target = $region44
      $region43: #{residual_block_forward.2} parent=39 // pred_region
        %s408 = smul.u32 8, %s15
        %p409 = scmp.lt.s32.totalorder %s408, 15
        %s410 = scalar_select %p409, %s408, 15
        %s411 = smul.addr %s410, 4
        %s412 = scalar_lea.vmem %s3, %s411
      $region44: #{residual_block_forward.2} parent=39 // pred_fallthru
        _
    $region40: #{residual_block_forward.2} parent=5 // pred_fallthru
      _
  $region6: #{residual_block_forward.2} parent=0 // loop_footer
    %s13 = sadd.s32 1, %s9
  $region7: #{residual_block_forward.2} parent=0 // loop_footer_branch
    %8 = sbr.rel target = $region3
  $region8: #{residual_block_forward.2} parent=0 // loop_exit
    _

// kernel: residual_block_forward.3
$region0: #{residual_block_forward.3}
  #allocation0 [shape = 'u32[]', space=smem, size = 0x4, offset = 0x4, fixed_abs, tag = 'smem constant byte address 0x4 - core index']
  #allocation1 [shape = 'u32[144,128]{1,0:T(1,128)}', space=vmem, size = 0x12000, scoped, tag = 'internal scratch']
  %s0 = inlined_call_operand.vmem [shape: bf16[2,10,10,128], index: 0, kind: input, shape index: {}]
  %s1 = inlined_call_operand.vmem [shape: bf16[9,128,128], index: 1, kind: input, shape index: {}]
  %s2 = inlined_call_operand.vmem [shape: f32[1,128], index: 2, kind: input, shape index: {}]
  %s3 = inlined_call_operand.vmem [shape: bf16[2,8,8,128], index: 3, kind: input, shape index: {}]
  %s4 = inlined_call_operand.vmem [shape: bf16[128,128], index: 4, kind: input, shape index: {}]
  %s5 = inlined_call_operand.vmem [shape: f32[1,128], index: 5, kind: input, shape index: {}]
  %s6 = inlined_call_operand.vmem [shape: f32[2,8,8,128], index: 6, kind: output, shape index: {}]
  %s7 = sld [smem:[#allocation0]]
  $region57: #{residual_block_forward.3} parent=0
    _
  %s9 = ssub.s32 1, %s7
  %s10 = scalar_select 0, %s9, %s7
  loop: start=0, step=1, limit=4
  $region2: #{residual_block_forward.3} parent=0 // loop_pre_header
    _
  $region3: #{residual_block_forward.3} parent=0 // loop_header
    %s12 = sphi 0, %s16
    %p13 = scmp.ge.s32.totalorder %s12, 4
    %s22 = sphi 0, %s24
    %s25 = sphi 0, %s22
    %s26 = sphi 0, %s25
    %s42 = sphi 0, %s26
    %s46 = sphi 0, %s46
    %s48 = sphi 0, %s46
    %s49 = sphi 0, %s48
    %s63 = sphi 0, %s49
    %s67 = sphi 0, %s67
    %s69 = sphi 0, %s67
    %s70 = sphi 0, %s69
    %s84 = sphi 0, %s70
    %s90 = sphi 0, %s92
    %s93 = sphi 0, %s90
    %s94 = sphi 0, %s93
    %s110 = sphi 0, %s94
    %s114 = sphi 0, %s114
    %s116 = sphi 0, %s114
    %s117 = sphi 0, %s116
    %s131 = sphi 0, %s117
    %s135 = sphi 0, %s135
    %s137 = sphi 0, %s135
    %s138 = sphi 0, %s137
    %s152 = sphi 0, %s138
    %s158 = sphi 0, %s160
    %s161 = sphi 0, %s158
    %s162 = sphi 0, %s161
    %s178 = sphi 0, %s162
  $region4: #{residual_block_forward.3} parent=0 // loop_header_branch
    %15 = sbr.rel (%p13) target = $region8
  $region5: #{residual_block_forward.3} parent=0 // loop_body
    %s17 = ssub.s32 %s12, 1
    %s18 = ssub.s32 %s12, 2
    %s19 = sadd.s32 %s12, 1
    %s20 = ssub.s32 %s12, %s19
    %p21 = scmp.eq.s32.totalorder %s20, 0
    %s23 = sadd.s32 %s22, 1
    %s24 = scalar_select %p21, %s22, %s23
    %p27 = pneg %p21
    %p28 = scmp.eq.s32.totalorder %s12, 1
    %p29 = por %p27, %p28
    %p30 = scmp.ne.s32.totalorder %s22, %s25
    %p31 = scmp.eq.s32.totalorder %s12, 0
    %p32 = por %p30, %p31
    %p33 = scmp.ne.s32.totalorder %s22, %s25
    %p34 = scmp.eq.s32.totalorder %s17, 1
    %p35 = por %p33, %p34
    %p36 = scmp.ne.s32.totalorder %s25, %s26
    %p37 = scmp.eq.s32.totalorder %s17, 0
    %p38 = por %p36, %p37
    %p39 = scmp.ne.s32.totalorder %s25, %s26
    %p40 = scmp.eq.s32.totalorder %s18, 1
    %p41 = por %p39, %p40
    %p43 = scmp.ne.s32.totalorder %s26, %s42
    %p44 = scmp.eq.s32.totalorder %s18, 0
    %p45 = por %p43, %p44
    %s47 = sadd.s32 %s46, 1
    %p50 = scmp.eq.s32.totalorder %s12, 1
    %p51 = scmp.ne.s32.totalorder %s46, %s48
    %p52 = scmp.eq.s32.totalorder %s12, 0
    %p53 = por %p51, %p52
    %p54 = scmp.ne.s32.totalorder %s46, %s48
    %p55 = scmp.eq.s32.totalorder %s17, 1
    %p56 = por %p54, %p55
    %p57 = scmp.ne.s32.totalorder %s48, %s49
    %p58 = scmp.eq.s32.totalorder %s17, 0
    %p59 = por %p57, %p58
    %p60 = scmp.ne.s32.totalorder %s48, %s49
    %p61 = scmp.eq.s32.totalorder %s18, 1
    %p62 = por %p60, %p61
    %p64 = scmp.ne.s32.totalorder %s49, %s63
    %p65 = scmp.eq.s32.totalorder %s18, 0
    %p66 = por %p64, %p65
    %s68 = sadd.s32 %s67, 1
    %p71 = scmp.eq.s32.totalorder %s12, 1
    %p72 = scmp.ne.s32.totalorder %s67, %s69
    %p73 = scmp.eq.s32.totalorder %s12, 0
    %p74 = por %p72, %p73
    %p75 = scmp.ne.s32.totalorder %s67, %s69
    %p76 = scmp.eq.s32.totalorder %s17, 1
    %p77 = por %p75, %p76
    %p78 = scmp.ne.s32.totalorder %s69, %s70
    %p79 = scmp.eq.s32.totalorder %s17, 0
    %p80 = por %p78, %p79
    %p81 = scmp.ne.s32.totalorder %s69, %s70
    %p82 = scmp.eq.s32.totalorder %s18, 1
    %p83 = por %p81, %p82
    %p85 = scmp.ne.s32.totalorder %s70, %s84
    %p86 = scmp.eq.s32.totalorder %s18, 0
    %p87 = por %p85, %p86
    %s88 = ssub.s32 %s12, %s19
    %p89 = scmp.eq.s32.totalorder %s88, 0
    %s91 = sadd.s32 %s90, 1
    %s92 = scalar_select %p89, %s90, %s91
    %p95 = pneg %p89
    %p96 = scmp.eq.s32.totalorder %s12, 1
    %p97 = por %p95, %p96
    %p98 = scmp.ne.s32.totalorder %s90, %s93
    %p99 = scmp.eq.s32.totalorder %s12, 0
    %p100 = por %p98, %p99
    %p101 = scmp.ne.s32.totalorder %s90, %s93
    %p102 = scmp.eq.s32.totalorder %s17, 1
    %p103 = por %p101, %p102
    %p104 = scmp.ne.s32.totalorder %s93, %s94
    %p105 = scmp.eq.s32.totalorder %s17, 0
    %p106 = por %p104, %p105
    %p107 = scmp.ne.s32.totalorder %s93, %s94
    %p108 = scmp.eq.s32.totalorder %s18, 1
    %p109 = por %p107, %p108
    %p111 = scmp.ne.s32.totalorder %s94, %s110
    %p112 = scmp.eq.s32.totalorder %s18, 0
    %p113 = por %p111, %p112
    %s115 = sadd.s32 %s114, 1
    %p118 = scmp.eq.s32.totalorder %s12, 1
    %p119 = scmp.ne.s32.totalorder %s114, %s116
    %p120 = scmp.eq.s32.totalorder %s12, 0
    %p121 = por %p119, %p120
    %p122 = scmp.ne.s32.totalorder %s114, %s116
    %p123 = scmp.eq.s32.totalorder %s17, 1
    %p124 = por %p122, %p123
    %p125 = scmp.ne.s32.totalorder %s116, %s117
    %p126 = scmp.eq.s32.totalorder %s17, 0
    %p127 = por %p125, %p126
    %p128 = scmp.ne.s32.totalorder %s116, %s117
    %p129 = scmp.eq.s32.totalorder %s18, 1
    %p130 = por %p128, %p129
    %p132 = scmp.ne.s32.totalorder %s117, %s131
    %p133 = scmp.eq.s32.totalorder %s18, 0
    %p134 = por %p132, %p133
    %s136 = sadd.s32 %s135, 1
    %p139 = scmp.eq.s32.totalorder %s12, 1
    %p140 = scmp.ne.s32.totalorder %s135, %s137
    %p141 = scmp.eq.s32.totalorder %s12, 0
    %p142 = por %p140, %p141
    %p143 = scmp.ne.s32.totalorder %s135, %s137
    %p144 = scmp.eq.s32.totalorder %s17, 1
    %p145 = por %p143, %p144
    %p146 = scmp.ne.s32.totalorder %s137, %s138
    %p147 = scmp.eq.s32.totalorder %s17, 0
    %p148 = por %p146, %p147
    %p149 = scmp.ne.s32.totalorder %s137, %s138
    %p150 = scmp.eq.s32.totalorder %s18, 1
    %p151 = por %p149, %p150
    %p153 = scmp.ne.s32.totalorder %s138, %s152
    %p154 = scmp.eq.s32.totalorder %s18, 0
    %p155 = por %p153, %p154
    %s156 = ssub.s32 %s12, %s19
    %p157 = scmp.eq.s32.totalorder %s156, 0
    %s159 = sadd.s32 %s158, 1
    %s160 = scalar_select %p157, %s158, %s159
    %p163 = pneg %p157
    %p164 = scmp.eq.s32.totalorder %s12, 1
    %p165 = por %p163, %p164
    %p166 = scmp.ne.s32.totalorder %s158, %s161
    %p167 = scmp.eq.s32.totalorder %s12, 0
    %p168 = por %p166, %p167
    %p169 = scmp.ne.s32.totalorder %s158, %s161
    %p170 = scmp.eq.s32.totalorder %s17, 1
    %p171 = por %p169, %p170
    %p172 = scmp.ne.s32.totalorder %s161, %s162
    %p173 = scmp.eq.s32.totalorder %s17, 0
    %p174 = por %p172, %p173
    %p175 = scmp.ne.s32.totalorder %s161, %s162
    %p176 = scmp.eq.s32.totalorder %s18, 1
    %p177 = por %p175, %p176
    %p179 = scmp.ne.s32.totalorder %s162, %s178
    %p180 = scmp.eq.s32.totalorder %s18, 0
    %p181 = por %p179, %p180
    %p182 = scmp.le.s32.totalorder 1, %s12
    %p183 = scmp.lt.s32.totalorder %s12, 3
    %p184 = pnand %p182, %p183
    %p185 = pneg %p184
    // Predicated region
    $region9: #{residual_block_forward.3} parent=5 // pred_check
      _
    $region10: #{residual_block_forward.3} parent=5 // pred_check_branch
      %187 = sbr.rel (%p184) target = $region12
    $region11: #{residual_block_forward.3} parent=5 // pred_region
      %s188 = ssub.s32 %s12, 1
      // Predicated region
      $region13: #{residual_block_forward.3} parent=11 // pred_check
        %p189 = pneg %p59
      $region14: #{residual_block_forward.3} parent=11 // pred_check_branch
        %191 = sbr.rel (%p189) target = $region16
      $region15: #{residual_block_forward.3} parent=11 // pred_region
        _
      $region16: #{residual_block_forward.3} parent=11 // pred_fallthru
        _
      // Predicated region
      $region17: #{residual_block_forward.3} parent=11 // pred_check
        %p192 = pneg %p80
      $region18: #{residual_block_forward.3} parent=11 // pred_check_branch
        %194 = sbr.rel (%p192) target = $region20
      $region19: #{residual_block_forward.3} parent=11 // pred_region
        _
      $region20: #{residual_block_forward.3} parent=11 // pred_fallthru
        _
      // Predicated region
      $region21: #{residual_block_forward.3} parent=11 // pred_check
        %p195 = pneg %p127
      $region22: #{residual_block_forward.3} parent=11 // pred_check_branch
        %197 = sbr.rel (%p195) target = $region24
      $region23: #{residual_block_forward.3} parent=11 // pred_region
        _
      $region24: #{residual_block_forward.3} parent=11 // pred_fallthru
        _
      // Predicated region
      $region25: #{residual_block_forward.3} parent=11 // pred_check
        %p198 = pneg %p148
      $region26: #{residual_block_forward.3} parent=11 // pred_check_branch
        %200 = sbr.rel (%p198) target = $region28
      $region27: #{residual_block_forward.3} parent=11 // pred_region
        _
      $region28: #{residual_block_forward.3} parent=11 // pred_fallthru
        _
    $region12: #{residual_block_forward.3} parent=5 // pred_fallthru
      _
    %p201 = scmp.lt.s32.totalorder %s12, 2
    // Predicated region
    $region29: #{residual_block_forward.3} parent=5 // pred_check
      %p202 = pneg %p201
    $region30: #{residual_block_forward.3} parent=5 // pred_check_branch
      %204 = sbr.rel (%p202) target = $region32
    $region31: #{residual_block_forward.3} parent=5 // pred_region
      // Predicated region
      $region33: #{residual_block_forward.3} parent=31 // pred_check
        %p205 = pneg %p32
      $region34: #{residual_block_forward.3} parent=31 // pred_check_branch
        %207 = sbr.rel (%p205) target = $region36
      $region35: #{residual_block_forward.3} parent=31 // pred_region
        %p208 = scmp.lt.s32.totalorder %s12, 1
        %s209 = scalar_select %p208, %s12, 1
        %s210 = smul.addr %s209, 20
        %s211 = smul.addr %s210, 4
        %s212 = scalar_lea.vmem %s0, %s211
      $region36: #{residual_block_forward.3} parent=31 // pred_fallthru
        _
      // Predicated region
      $region37: #{residual_block_forward.3} parent=31 // pred_check
        %p213 = pneg %p100
      $region38: #{residual_block_forward.3} parent=31 // pred_check_branch
        %215 = sbr.rel (%p213) target = $region40
      $region39: #{residual_block_forward.3} parent=31 // pred_region
        %p216 = scmp.lt.s32.totalorder %s12, 1
        %s217 = scalar_select %p216, %s12, 1
        %s218 = smul.addr %s217, 8
        %s219 = smul.addr %s218, 4
        %s220 = scalar_lea.vmem %s3, %s219
      $region40: #{residual_block_forward.3} parent=31 // pred_fallthru
        _
    $region32: #{residual_block_forward.3} parent=5 // pred_fallthru
      _
    %p221 = scmp.le.s32.totalorder 1, %s12
    %p222 = scmp.lt.s32.totalorder %s12, 3
    %p223 = pnand %p221, %p222
    %p224 = pneg %p223
    // Predicated region
    $region41: #{residual_block_forward.3} parent=5 // pred_check
      _
    $region42: #{residual_block_forward.3} parent=5 // pred_check_branch
      %226 = sbr.rel (%p223) target = $region44
    $region43: #{residual_block_forward.3} parent=5 // pred_region
      %s227 = ssub.s32 %s12, 1
      %p228 = scmp.lt.s32.totalorder %s17, 1
      %s229 = scalar_select %p228, %s17, 1
      %s230 = smul.addr %s229, 20
      %s231 = smul.addr %s230, 4
      %s232 = scalar_lea.vmem %s0, %s231
      %p233 = pneg %p38
      %p234 = pneg %p35
      %p235 = pneg %p59
      %p236 = pneg %p56
      %p237 = pneg %p80
      %p238 = pneg %p77
      %p239 = scmp.lt.s32.totalorder %s17, 1
      %s240 = scalar_select %p239, %s17, 1
      %s241 = smul.addr %s240, 8
      %s242 = smul.addr %s241, 4
      %s243 = scalar_lea.vmem %s3, %s242
      %p244 = pneg %p106
      %p245 = pneg %p103
      %p246 = pneg %p127
      %p247 = pneg %p124
      %p248 = pneg %p148
      %p249 = pneg %p145
      %p250 = pneg %p174
      %p251 = pneg %p171
      %p252 = scmp.lt.s32.totalorder %s17, 1
      %s253 = scalar_select %p252, %s17, 1
      %s254 = smul.addr %s253, 8
      %s255 = smul.addr %s254, 8
      %s256 = scalar_lea.vmem %s6, %s255
      %p257 = scmp.lt.s32.totalorder %s17, 1
      %s258 = scalar_select %p257, %s17, 1
      %s259 = smul.addr %s258, 20
      %s260 = smul.addr %s259, 4
      %s261 = scalar_lea.vmem %s0, %s260
      %p262 = scmp.lt.s32.totalorder %s17, 1
      %s263 = scalar_select %p262, %s17, 1
      %s264 = smul.addr %s263, 8
      %s265 = smul.addr %s264, 4
      %s266 = scalar_lea.vmem %s3, %s265
      %p267 = scmp.lt.s32.totalorder %s17, 1
      %s268 = scalar_select %p267, %s17, 1
      %s269 = smul.addr %s268, 8
      %s270 = smul.addr %s269, 8
      %s271 = scalar_lea.vmem %s6, %s270
      %v273 = vld [vmem:[%s261] sm:$0xf]
      %v274 = vld [vmem:[%s261 + $0x8] sm:$0xf]
      %v275 = vld [vmem:[%s261 + $0x10] sm:$0xf]
      %v276 = vld [vmem:[%s261 + $0x18] sm:$0xf]
      %v277 = vld [vmem:[%s261 + $0x20] sm:$0xf]
      %v278 = vld [vmem:[%s261 + $0x28] sm:$0xf]
      %v279 = vld [vmem:[%s261 + $0x30] sm:$0xf]
      %v280 = vld [vmem:[%s261 + $0x38] sm:$0xf]
      %v281 = vld [vmem:[%s1] sm:$0xf]
      %v282 = vld [vmem:[%s1 + $0x4] sm:$0xf]
      %v283 = vld [vmem:[%s1 + $0x8] sm:$0xf]
      %v284 = vld [vmem:[%s1 + $0xc] sm:$0xf]
      %v285 = vld [vmem:[%s1 + $0x10] sm:$0xf]
      %v286 = vld [vmem:[%s1 + $0x14] sm:$0xf]
      %v287 = vld [vmem:[%s1 + $0x18] sm:$0xf]
      %v288 = vld [vmem:[%s1 + $0x1c] sm:$0xf]
      %v289 = vld [vmem:[%s1 + $0x20] sm:$0xf]
      %v290 = vld [vmem:[%s1 + $0x24] sm:$0xf]
      %v291 = vld [vmem:[%s1 + $0x28] sm:$0xf]
      %v292 = vld [vmem:[%s1 + $0x2c] sm:$0xf]
      %v293 = vld [vmem:[%s1 + $0x30] sm:$0xf]
      %v294 = vld [vmem:[%s1 + $0x34] sm:$0xf]
      %v295 = vld [vmem:[%s1 + $0x38] sm:$0xf]
      %v296 = vld [vmem:[%s1 + $0x3c] sm:$0xf]
      %v297 = vld [vmem:[%s261 + $0x4] sm:$0x1]
      %v298 = vld [vmem:[%s261 + $0xc] sm:$0x1]
      %v299 = vld [vmem:[%s261 + $0x14] sm:$0x1]
      %v300 = vld [vmem:[%s261 + $0x1c] sm:$0x1]
      %v301 = vld [vmem:[%s261 + $0x24] sm:$0x1]
      %v302 = vld [vmem:[%s261 + $0x2c] sm:$0x1]
      %v303 = vld [vmem:[%s261 + $0x34] sm:$0x1]
      %v304 = vld [vmem:[%s261 + $0x3c] sm:$0x1]
      %vm305 = vsmask.f32 3328
      %vm306 = vsmask.f32 7440
      %vm307 = vmor %vm305, %vm306
      %v309 = vshrl.u32 %v273, 16
      %v311 = vrot.slane %v309, 4
      %v312 = vshll.u32 %v273, 16
      %v314 = vrot.slane %v312, 5
      %v315 = vor.u32 %v311, %v314
      %v316 = vrot.slane %v315, 4
      %v318 = vshll.u32 %v297, 16
      %v320 = vrot.slane %v318, 5
      %v321 = vsel %vm307, %v316, %v320
      %v323 = vshrl.u32 %v274, 16
      %v325 = vrot.slane %v323, 4
      %v326 = vshll.u32 %v274, 16
      %v328 = vrot.slane %v326, 5
      %v329 = vor.u32 %v325, %v328
      %v330 = vrot.slane %v329, 4
      %v332 = vshll.u32 %v298, 16
      %v334 = vrot.slane %v332, 5
      %v335 = vsel %vm307, %v330, %v334
      %v337 = vshrl.u32 %v275, 16
      %v339 = vrot.slane %v337, 4
      %v340 = vshll.u32 %v275, 16
      %v342 = vrot.slane %v340, 5
      %v343 = vor.u32 %v339, %v342
      %v344 = vrot.slane %v343, 4
      %v346 = vshll.u32 %v299, 16
      %v348 = vrot.slane %v346, 5
      %v349 = vsel %vm307, %v344, %v348
      %v351 = vshrl.u32 %v276, 16
      %v353 = vrot.slane %v351, 4
      %v354 = vshll.u32 %v276, 16
      %v356 = vrot.slane %v354, 5
      %v357 = vor.u32 %v353, %v356
      %v358 = vrot.slane %v357, 4
      %v360 = vshll.u32 %v300, 16
      %v362 = vrot.slane %v360, 5
      %v363 = vsel %vm307, %v358, %v362
      %v365 = vshrl.u32 %v277, 16
      %v367 = vrot.slane %v365, 4
      %v368 = vshll.u32 %v277, 16
      %v370 = vrot.slane %v368, 5
      %v371 = vor.u32 %v367, %v370
      %v372 = vrot.slane %v371, 4
      %v374 = vshll.u32 %v301, 16
      %v376 = vrot.slane %v374, 5
      %v377 = vsel %vm307, %v372, %v376
      %v379 = vshrl.u32 %v278, 16
      %v381 = vrot.slane %v379, 4
      %v382 = vshll.u32 %v278, 16
      %v384 = vrot.slane %v382, 5
      %v385 = vor.u32 %v381, %v384
      %v386 = vrot.slane %v385, 4
      %v388 = vshll.u32 %v302, 16
      %v390 = vrot.slane %v388, 5
      %v391 = vsel %vm307, %v386, %v390
      %v393 = vshrl.u32 %v279, 16
      %v395 = vrot.slane %v393, 4
      %v396 = vshll.u32 %v279, 16
      %v398 = vrot.slane %v396, 5
      %v399 = vor.u32 %v395, %v398
      %v400 = vrot.slane %v399, 4
      %v402 = vshll.u32 %v303, 16
      %v404 = vrot.slane %v402, 5
      %v405 = vsel %vm307, %v400, %v404
      %v407 = vshrl.u32 %v280, 16
      %v409 = vrot.slane %v407, 4
      %v410 = vshll.u32 %v280, 16
      %v412 = vrot.slane %v410, 5
      %v413 = vor.u32 %v409, %v412
      %v414 = vrot.slane %v413, 4
      %v416 = vshll.u32 %v304, 16
      %v418 = vrot.slane %v416, 5
      %v419 = vsel %vm307, %v414, %v418
      %s420 = scalar_lea.vmem %s1, 64
      %v421 = vld [vmem:[%s420] sm:$0xf]
      %v422 = vld [vmem:[%s420 + $0x4] sm:$0xf]
      %v423 = vld [vmem:[%s420 + $0x8] sm:$0xf]
      %v424 = vld [vmem:[%s420 + $0xc] sm:$0xf]
      %v425 = vld [vmem:[%s420 + $0x10] sm:$0xf]
      %v426 = vld [vmem:[%s420 + $0x14] sm:$0xf]
      %v427 = vld [vmem:[%s420 + $0x18] sm:$0xf]
      %v428 = vld [vmem:[%s420 + $0x1c] sm:$0xf]
      %v429 = vld [vmem:[%s420 + $0x20] sm:$0xf]
      %v430 = vld [vmem:[%s420 + $0x24] sm:$0xf]
      %v431 = vld [vmem:[%s420 + $0x28] sm:$0xf]
      %v432 = vld [vmem:[%s420 + $0x2c] sm:$0xf]
      %v433 = vld [vmem:[%s420 + $0x30] sm:$0xf]
      %v434 = vld [vmem:[%s420 + $0x34] sm:$0xf]
      %v435 = vld [vmem:[%s420 + $0x38] sm:$0xf]
      %v436 = vld [vmem:[%s420 + $0x3c] sm:$0xf]
      %v437 = vunpack.c.l.b16 %v321
      %v438 = vunpack.c.l.b16 %v335
      %v439 = vunpack.c.l.b16 %v349
      %v440 = vunpack.c.l.b16 %v363
      %v441 = vunpack.c.l.b16 %v377
      %v442 = vunpack.c.l.b16 %v391
      %v443 = vunpack.c.l.b16 %v405
      %v444 = vunpack.c.l.b16 %v419
      %v445 = vpack.c.b16 %v438, %v437
      %v446 = vpack.c.b16 %v440, %v439
      %v447 = vpack.c.b16 %v442, %v441
      %v448 = vpack.c.b16 %v444, %v443
      %v469 = vunpack.c.l.b16 %v421
      %v470 = vunpack.c.l.b16 %v422
      %v471 = vunpack.c.l.b16 %v423
      %v472 = vunpack.c.l.b16 %v424
      %v473 = vunpack.c.l.b16 %v425
      %v474 = vunpack.c.l.b16 %v426
      %v475 = vunpack.c.l.b16 %v427
      %v476 = vunpack.c.l.b16 %v428
      %v477 = vunpack.c.l.b16 %v429
      %v478 = vunpack.c.l.b16 %v430
      %v479 = vunpack.c.l.b16 %v431
      %v480 = vunpack.c.l.b16 %v432
      %v481 = vunpack.c.l.b16 %v433
      %v482 = vunpack.c.l.b16 %v434
      %v483 = vunpack.c.l.b16 %v435
      %v484 = vunpack.c.l.b16 %v436
      %v485 = vpack.c.b16 %v470, %v469
      %v486 = vpack.c.b16 %v472, %v471
      %v487 = vpack.c.b16 %v474, %v473
      %v488 = vpack.c.b16 %v476, %v475
      %v489 = vpack.c.b16 %v478, %v477
      %v490 = vpack.c.b16 %v480, %v479
      %v491 = vpack.c.b16 %v482, %v481
      %v492 = vpack.c.b16 %v484, %v483
      %501 = vmatprep.subr.bf16.mxu0 0
      %502 = vmatpush1.bf16.msra.mxu0 %v492
      %503 = vmatprep.subr.bf16.mxu0 0
      %504 = vmatpush1.bf16.msra.mxu0 %v491
      %505 = vmatprep.subr.bf16.mxu0 0
      %506 = vmatpush1.bf16.msra.mxu0 %v490
      %507 = vmatprep.subr.bf16.mxu0 0
      %508 = vmatpush1.bf16.msra.mxu0 %v489
      %509 = vmatprep.subr.bf16.mxu0 0
      %510 = vmatpush1.bf16.msra.mxu0 %v488
      %511 = vmatprep.subr.bf16.mxu0 0
      %512 = vmatpush1.bf16.msra.mxu0 %v487
      %513 = vmatprep.subr.bf16.mxu0 0
      %514 = vmatpush1.bf16.msra.mxu0 %v486
      %515 = vmatprep.subr.bf16.mxu0 0
      %516 = vmatpush1.bf16.msra.mxu0 %v485
      %517 = vmatprep.subr.bf16.mxu0 0
      %518 = vmatpush2.bf16.msra.mxu0 0
      %519 = vmatprep.subr.bf16.mxu0 0
      %520 = vmatpush2.bf16.msra.mxu0 0
      %521 = vmatprep.subr.bf16.mxu0 0
      %522 = vmatpush2.bf16.msra.mxu0 0
      %523 = vmatprep.subr.bf16.mxu0 0
      %524 = vmatpush2.bf16.msra.mxu0 0
      %525 = vmatprep.subr.bf16.mxu0 0
      %526 = vmatpush2.bf16.msra.mxu0 0
      %527 = vmatprep.subr.bf16.mxu0 0
      %528 = vmatpush2.bf16.msra.mxu0 0
      %529 = vmatprep.subr.bf16.mxu0 0
      %530 = vmatpush2.bf16.msra.mxu0 0
      %531 = vmatprep.subr.bf16.mxu0 0
      %532 = vmatpush2.bf16.msra.mxu0 0
      %533 = vmatprep.mubr.bf16.mxu0 0
      %534 = vmatmul.mubr.bf16.gmra.mxu0 %v445
      %v535 = vpop.f32.mrf.mxu0
      %v536 = vadd.f32 0.0, %v535
      %v537 = vpop.f32.mrf.mxu0
      %v538 = vpop.f32.mrf.mxu0
      %v539 = vadd.f32 0.0, %v538
      %v540 = vpop.f32.mrf.mxu0
      %541 = vmatprep.mubr.bf16.mxu0 0
      %542 = vmatmul.mubr.bf16.gmra.mxu0 %v446
      %v543 = vpop.f32.mrf.mxu0
      %v544 = vadd.f32 0.0, %v543
      %v545 = vpop.f32.mrf.mxu0
      %v546 = vpop.f32.mrf.mxu0
      %v547 = vadd.f32 0.0, %v546
      %v548 = vpop.f32.mrf.mxu0
      %549 = vmatprep.mubr.bf16.mxu0 0
      %550 = vmatmul.mubr.bf16.gmra.mxu0 %v447
      %v551 = vpop.f32.mrf.mxu0
      %v552 = vadd.f32 0.0, %v551
      %v553 = vpop.f32.mrf.mxu0
      %v554 = vpop.f32.mrf.mxu0
      %v555 = vadd.f32 0.0, %v554
      %v556 = vpop.f32.mrf.mxu0
      %557 = vmatprep.mubr.bf16.mxu0 0
      %558 = vmatmul.mubr.bf16.gmra.mxu0 %v448
      %v559 = vpop.f32.mrf.mxu0
      %v560 = vadd.f32 0.0, %v559
      %v561 = vpop.f32.mrf.mxu0
      %v562 = vpop.f32.mrf.mxu0
      %v563 = vadd.f32 0.0, %v562
      %v564 = vpop.f32.mrf.mxu0
      %565 = vdwg.mxu0
      %v574 = vunpack.c.l.b16 %v273
      %v575 = vunpack.c.l.b16 %v274
      %v576 = vunpack.c.l.b16 %v275
      %v577 = vunpack.c.l.b16 %v276
      %v578 = vunpack.c.l.b16 %v277
      %v579 = vunpack.c.l.b16 %v278
      %v580 = vunpack.c.l.b16 %v279
      %v581 = vunpack.c.l.b16 %v280
      %v582 = vpack.c.b16 %v575, %v574
      %v583 = vpack.c.b16 %v577, %v576
      %v584 = vpack.c.b16 %v579, %v578
      %v585 = vpack.c.b16 %v581, %v580
      %v606 = vunpack.c.l.b16 %v281
      %v607 = vunpack.c.l.b16 %v282
      %v608 = vunpack.c.l.b16 %v283
      %v609 = vunpack.c.l.b16 %v284
      %v610 = vunpack.c.l.b16 %v285
      %v611 = vunpack.c.l.b16 %v286
      %v612 = vunpack.c.l.b16 %v287
      %v613 = vunpack.c.l.b16 %v288
      %v614 = vunpack.c.l.b16 %v289
      %v615 = vunpack.c.l.b16 %v290
      %v616 = vunpack.c.l.b16 %v291
      %v617 = vunpack.c.l.b16 %v292
      %v618 = vunpack.c.l.b16 %v293
      %v619 = vunpack.c.l.b16 %v294
      %v620 = vunpack.c.l.b16 %v295
      %v621 = vunpack.c.l.b16 %v296
      %v622 = vpack.c.b16 %v607, %v606
      %v623 = vpack.c.b16 %v609, %v608
      %v624 = vpack.c.b16 %v611, %v610
      %v625 = vpack.c.b16 %v613, %v612
      %v626 = vpack.c.b16 %v615, %v614
      %v627 = vpack.c.b16 %v617, %v616
      %v628 = vpack.c.b16 %v619, %v618
      %v629 = vpack.c.b16 %v621, %v620
      %638 = vmatprep.subr.bf16.mxu0 0
      %639 = vmatpush1.bf16.msra.mxu0 %v629
      %640 = vmatprep.subr.bf16.mxu0 0
      %641 = vmatpush1.bf16.msra.mxu0 %v628
      %642 = vmatprep.subr.bf16.mxu0 0
      %643 = vmatpush1.bf16.msra.mxu0 %v627
      %644 = vmatprep.subr.bf16.mxu0 0
      %645 = vmatpush1.bf16.msra.mxu0 %v626
      %646 = vmatprep.subr.bf16.mxu0 0
      %647 = vmatpush1.bf16.msra.mxu0 %v625
      %648 = vmatprep.subr.bf16.mxu0 0
      %649 = vmatpush1.bf16.msra.mxu0 %v624
      %650 = vmatprep.subr.bf16.mxu0 0
      %651 = vmatpush1.bf16.msra.mxu0 %v623
      %652 = vmatprep.subr.bf16.mxu0 0
      %653 = vmatpush1.bf16.msra.mxu0 %v622
      %654 = vmatprep.subr.bf16.mxu0 0
      %655 = vmatpush2.bf16.msra.mxu0 0
      %656 = vmatprep.subr.bf16.mxu0 0
      %657 = vmatpush2.bf16.msra.mxu0 0
      %658 = vmatprep.subr.bf16.mxu0 0
      %659 = vmatpush2.bf16.msra.mxu0 0
      %660 = vmatprep.subr.bf16.mxu0 0
      %661 = vmatpush2.bf16.msra.mxu0 0
      %662 = vmatprep.subr.bf16.mxu0 0
      %663 = vmatpush2.bf16.msra.mxu0 0
      %664 = vmatprep.subr.bf16.mxu0 0
      %665 = vmatpush2.bf16.msra.mxu0 0
      %666 = vmatprep.subr.bf16.mxu0 0
      %667 = vmatpush2.bf16.msra.mxu0 0
      %668 = vmatprep.subr.bf16.mxu0 0
      %669 = vmatpush2.bf16.msra.mxu0 0
      %670 = vmatprep.mubr.bf16.mxu0 0
      %671 = vmatmul.mubr.bf16.gmra.mxu0 %v582
      %v672 = vpop.f32.mrf.mxu0
      %v673 = vadd.f32 %v536, %v672
      %v674 = vpop.f32.mrf.mxu0
      %v675 = vpop.f32.mrf.mxu0
      %v676 = vadd.f32 %v539, %v675
      %v677 = vpop.f32.mrf.mxu0
      %678 = vmatprep.mubr.bf16.mxu0 0
      %679 = vmatmul.mubr.bf16.gmra.mxu0 %v583
      %v680 = vpop.f32.mrf.mxu0
      %v681 = vadd.f32 %v544, %v680
      %v682 = vpop.f32.mrf.mxu0
      %v683 = vpop.f32.mrf.mxu0
      %v684 = vadd.f32 %v547, %v683
      %v685 = vpop.f32.mrf.mxu0
      %686 = vmatprep.mubr.bf16.mxu0 0
      %687 = vmatmul.mubr.bf16.gmra.mxu0 %v584
      %v688 = vpop.f32.mrf.mxu0
      %v689 = vadd.f32 %v552, %v688
      %v690 = vpop.f32.mrf.mxu0
      %v691 = vpop.f32.mrf.mxu0
      %v692 = vadd.f32 %v555, %v691
      %v693 = vpop.f32.mrf.mxu0
      %694 = vmatprep.mubr.bf16.mxu0 0
      %695 = vmatmul.mubr.bf16.gmra.mxu0 %v585
      %v696 = vpop.f32.mrf.mxu0
      %v697 = vadd.f32 %v560, %v696
      %v698 = vpop.f32.mrf.mxu0
      %v699 = vpop.f32.mrf.mxu0
      %v700 = vadd.f32 %v563, %v699
      %v701 = vpop.f32.mrf.mxu0
      %702 = vdwg.mxu0
      %v703 = vld [vmem:[%s261] sm:$0xe]
      %v704 = vld [vmem:[%s261 + $0x8] sm:$0xe]
      %v705 = vld [vmem:[%s261 + $0x10] sm:$0xe]
      %v706 = vld [vmem:[%s261 + $0x18] sm:$0xe]
      %v707 = vld [vmem:[%s261 + $0x20] sm:$0xe]
      %v708 = vld [vmem:[%s261 + $0x28] sm:$0xe]
      %v709 = vld [vmem:[%s261 + $0x30] sm:$0xe]
      %v710 = vld [vmem:[%s261 + $0x38] sm:$0xe]
      %vm727 = vcmask 1042432
      %vm728 = vcmask 1046532
      %vm729 = vmor %vm727, %vm728
      %v730 = vrot.slane %v703, 5
      %v731 = vrot.slane %v730, 4
      %v732 = vrot.slane %v297, 5
      %v733 = vsel %vm729, %v731, %v732
      %v734 = vrot.slane %v704, 5
      %v735 = vrot.slane %v734, 4
      %v736 = vrot.slane %v298, 5
      %v737 = vsel %vm729, %v735, %v736
      %v738 = vrot.slane %v705, 5
      %v739 = vrot.slane %v738, 4
      %v740 = vrot.slane %v299, 5
      %v741 = vsel %vm729, %v739, %v740
      %v742 = vrot.slane %v706, 5
      %v743 = vrot.slane %v742, 4
      %v744 = vrot.slane %v300, 5
      %v745 = vsel %vm729, %v743, %v744
      %v746 = vrot.slane %v707, 5
      %v747 = vrot.slane %v746, 4
      %v748 = vrot.slane %v301, 5
      %v749 = vsel %vm729, %v747, %v748
      %v750 = vrot.slane %v708, 5
      %v751 = vrot.slane %v750, 4
      %v752 = vrot.slane %v302, 5
      %v753 = vsel %vm729, %v751, %v752
      %v754 = vrot.slane %v709, 5
      %v755 = vrot.slane %v754, 4
      %v756 = vrot.slane %v303, 5
      %v757 = vsel %vm729, %v755, %v756
      %v758 = vrot.slane %v710, 5
      %v759 = vrot.slane %v758, 4
      %v760 = vrot.slane %v304, 5
      %v761 = vsel %vm729, %v759, %v760
      %s762 = scalar_lea.vmem %s1, 128
      %v763 = vld [vmem:[%s762] sm:$0xf]
      %v764 = vld [vmem:[%s762 + $0x4] sm:$0xf]
      %v765 = vld [vmem:[%s762 + $0x8] sm:$0xf]
      %v766 = vld [vmem:[%s762 + $0xc] sm:$0xf]
      %v767 = vld [vmem:[%s762 + $0x10] sm:$0xf]
      %v768 = vld [vmem:[%s762 + $0x14] sm:$0xf]
      %v769 = vld [vmem:[%s762 + $0x18] sm:$0xf]
      %v770 = vld [vmem:[%s762 + $0x1c] sm:$0xf]
      %v771 = vld [vmem:[%s762 + $0x20] sm:$0xf]
      %v772 = vld [vmem:[%s762 + $0x24] sm:$0xf]
      %v773 = vld [vmem:[%s762 + $0x28] sm:$0xf]
      %v774 = vld [vmem:[%s762 + $0x2c] sm:$0xf]
      %v775 = vld [vmem:[%s762 + $0x30] sm:$0xf]
      %v776 = vld [vmem:[%s762 + $0x34] sm:$0xf]
      %v777 = vld [vmem:[%s762 + $0x38] sm:$0xf]
      %v778 = vld [vmem:[%s762 + $0x3c] sm:$0xf]
      %v779 = vunpack.c.l.b16 %v733
      %v780 = vunpack.c.l.b16 %v737
      %v781 = vunpack.c.l.b16 %v741
      %v782 = vunpack.c.l.b16 %v745
      %v783 = vunpack.c.l.b16 %v749
      %v784 = vunpack.c.l.b16 %v753
      %v785 = vunpack.c.l.b16 %v757
      %v786 = vunpack.c.l.b16 %v761
      %v787 = vpack.c.b16 %v780, %v779
      %v788 = vpack.c.b16 %v782, %v781
      %v789 = vpack.c.b16 %v784, %v783
      %v790 = vpack.c.b16 %v786, %v785
      %v811 = vunpack.c.l.b16 %v763
      %v812 = vunpack.c.l.b16 %v764
      %v813 = vunpack.c.l.b16 %v765
      %v814 = vunpack.c.l.b16 %v766
      %v815 = vunpack.c.l.b16 %v767
      %v816 = vunpack.c.l.b16 %v768
      %v817 = vunpack.c.l.b16 %v769
      %v818 = vunpack.c.l.b16 %v770
      %v819 = vunpack.c.l.b16 %v771
      %v820 = vunpack.c.l.b16 %v772
      %v821 = vunpack.c.l.b16 %v773
      %v822 = vunpack.c.l.b16 %v774
      %v823 = vunpack.c.l.b16 %v775
      %v824 = vunpack.c.l.b16 %v776
      %v825 = vunpack.c.l.b16 %v777
      %v826 = vunpack.c.l.b16 %v778
      %v827 = vpack.c.b16 %v812, %v811
      %v828 = vpack.c.b16 %v814, %v813
      %v829 = vpack.c.b16 %v816, %v815
      %v830 = vpack.c.b16 %v818, %v817
      %v831 = vpack.c.b16 %v820, %v819
      %v832 = vpack.c.b16 %v822, %v821
      %v833 = vpack.c.b16 %v824, %v823
      %v834 = vpack.c.b16 %v826, %v825
      %843 = vmatprep.subr.bf16.mxu0 0
      %844 = vmatpush1.bf16.msra.mxu0 %v834
      %845 = vmatprep.subr.bf16.mxu0 0
      %846 = vmatpush1.bf16.msra.mxu0 %v833
      %847 = vmatprep.subr.bf16.mxu0 0
      %848 = vmatpush1.bf16.msra.mxu0 %v832
      %849 = vmatprep.subr.bf16.mxu0 0
      %850 = vmatpush1.bf16.msra.mxu0 %v831
      %851 = vmatprep.subr.bf16.mxu0 0
      %852 = vmatpush1.bf16.msra.mxu0 %v830
      %853 = vmatprep.subr.bf16.mxu0 0
      %854 = vmatpush1.bf16.msra.mxu0 %v829
      %855 = vmatprep.subr.bf16.mxu0 0
      %856 = vmatpush1.bf16.msra.mxu0 %v828
      %857 = vmatprep.subr.bf16.mxu0 0
      %858 = vmatpush1.bf16.msra.mxu0 %v827
      %859 = vmatprep.subr.bf16.mxu0 0
      %860 = vmatpush2.bf16.msra.mxu0 0
      %861 = vmatprep.subr.bf16.mxu0 0
      %862 = vmatpush2.bf16.msra.mxu0 0
      %863 = vmatprep.subr.bf16.mxu0 0
      %864 = vmatpush2.bf16.msra.mxu0 0
      %865 = vmatprep.subr.bf16.mxu0 0
      %866 = vmatpush2.bf16.msra.mxu0 0
      %867 = vmatprep.subr.bf16.mxu0 0
      %868 = vmatpush2.bf16.msra.mxu0 0
      %869 = vmatprep.subr.bf16.mxu0 0
      %870 = vmatpush2.bf16.msra.mxu0 0
      %871 = vmatprep.subr.bf16.mxu0 0
      %872 = vmatpush2.bf16.msra.mxu0 0
      %873 = vmatprep.subr.bf16.mxu0 0
      %874 = vmatpush2.bf16.msra.mxu0 0
      %875 = vmatprep.mubr.bf16.mxu0 0
      %876 = vmatmul.mubr.bf16.gmra.mxu0 %v787
      %v877 = vpop.f32.mrf.mxu0
      %v878 = vadd.f32 0.0, %v877
      %v879 = vpop.f32.mrf.mxu0
      %v880 = vpop.f32.mrf.mxu0
      %v881 = vadd.f32 0.0, %v880
      %v882 = vpop.f32.mrf.mxu0
      %883 = vmatprep.mubr.bf16.mxu0 0
      %884 = vmatmul.mubr.bf16.gmra.mxu0 %v788
      %v885 = vpop.f32.mrf.mxu0
      %v886 = vadd.f32 0.0, %v885
      %v887 = vpop.f32.mrf.mxu0
      %v888 = vpop.f32.mrf.mxu0
      %v889 = vadd.f32 0.0, %v888
      %v890 = vpop.f32.mrf.mxu0
      %891 = vmatprep.mubr.bf16.mxu0 0
      %892 = vmatmul.mubr.bf16.gmra.mxu0 %v789
      %v893 = vpop.f32.mrf.mxu0
      %v894 = vadd.f32 0.0, %v893
      %v895 = vpop.f32.mrf.mxu0
      %v896 = vpop.f32.mrf.mxu0
      %v897 = vadd.f32 0.0, %v896
      %v898 = vpop.f32.mrf.mxu0
      %899 = vmatprep.mubr.bf16.mxu0 0
      %900 = vmatmul.mubr.bf16.gmra.mxu0 %v790
      %v901 = vpop.f32.mrf.mxu0
      %v902 = vadd.f32 0.0, %v901
      %v903 = vpop.f32.mrf.mxu0
      %v904 = vpop.f32.mrf.mxu0
      %v905 = vadd.f32 0.0, %v904
      %v906 = vpop.f32.mrf.mxu0
      %907 = vdwg.mxu0
      %v908 = vadd.f32 %v673, %v878
      %v909 = vadd.f32 %v676, %v881
      %v910 = vadd.f32 %v681, %v886
      %v911 = vadd.f32 %v684, %v889
      %v912 = vadd.f32 %v689, %v894
      %v913 = vadd.f32 %v692, %v897
      %v914 = vadd.f32 %v697, %v902
      %v915 = vadd.f32 %v700, %v905
      %s916 = scalar_lea.vmem %s261, 8
      %v917 = vld [vmem:[%s916] sm:$0xf]
      %v918 = vld [vmem:[%s916 + $0x8] sm:$0xf]
      %v919 = vld [vmem:[%s916 + $0x10] sm:$0xf]
      %v920 = vld [vmem:[%s916 + $0x18] sm:$0xf]
      %v921 = vld [vmem:[%s916 + $0x20] sm:$0xf]
      %v922 = vld [vmem:[%s916 + $0x28] sm:$0xf]
      %v923 = vld [vmem:[%s916 + $0x30] sm:$0xf]
      %v924 = vld [vmem:[%s916 + $0x38] sm:$0xf]
      %s925 = scalar_lea.vmem %s1, 192
      %v926 = vld [vmem:[%s925] sm:$0xf]
      %v927 = vld [vmem:[%s925 + $0x4] sm:$0xf]
      %v928 = vld [vmem:[%s925 + $0x8] sm:$0xf]
      %v929 = vld [vmem:[%s925 + $0xc] sm:$0xf]
      %v930 = vld [vmem:[%s925 + $0x10] sm:$0xf]
      %v931 = vld [vmem:[%s925 + $0x14] sm:$0xf]
      %v932 = vld [vmem:[%s925 + $0x18] sm:$0xf]
      %v933 = vld [vmem:[%s925 + $0x1c] sm:$0xf]
      %v934 = vld [vmem:[%s925 + $0x20] sm:$0xf]
      %v935 = vld [vmem:[%s925 + $0x24] sm:$0xf]
      %v936 = vld [vmem:[%s925 + $0x28] sm:$0xf]
      %v937 = vld [vmem:[%s925 + $0x2c] sm:$0xf]
      %v938 = vld [vmem:[%s925 + $0x30] sm:$0xf]
      %v939 = vld [vmem:[%s925 + $0x34] sm:$0xf]
      %v940 = vld [vmem:[%s925 + $0x38] sm:$0xf]
      %v941 = vld [vmem:[%s925 + $0x3c] sm:$0xf]
      %v950 = vunpack.c.l.b16 %v917
      %v951 = vunpack.c.l.b16 %v918
      %v952 = vunpack.c.l.b16 %v919
      %v953 = vunpack.c.l.b16 %v920
      %v954 = vunpack.c.l.b16 %v921
      %v955 = vunpack.c.l.b16 %v922
      %v956 = vunpack.c.l.b16 %v923
      %v957 = vunpack.c.l.b16 %v924
      %v958 = vpack.c.b16 %v951, %v950
      %v959 = vpack.c.b16 %v953, %v952
      %v960 = vpack.c.b16 %v955, %v954
      %v961 = vpack.c.b16 %v957, %v956
      %v982 = vunpack.c.l.b16 %v926
      %v983 = vunpack.c.l.b16 %v927
      %v984 = vunpack.c.l.b16 %v928
      %v985 = vunpack.c.l.b16 %v929
      %v986 = vunpack.c.l.b16 %v930
      %v987 = vunpack.c.l.b16 %v931
      %v988 = vunpack.c.l.b16 %v932
      %v989 = vunpack.c.l.b16 %v933
      %v990 = vunpack.c.l.b16 %v934
      %v991 = vunpack.c.l.b16 %v935
      %v992 = vunpack.c.l.b16 %v936
      %v993 = vunpack.c.l.b16 %v937
      %v994 = vunpack.c.l.b16 %v938
      %v995 = vunpack.c.l.b16 %v939
      %v996 = vunpack.c.l.b16 %v940
      %v997 = vunpack.c.l.b16 %v941
      %v998 = vpack.c.b16 %v983, %v982
      %v999 = vpack.c.b16 %v985, %v984
      %v1000 = vpack.c.b16 %v987, %v986
      %v1001 = vpack.c.b16 %v989, %v988
      %v1002 = vpack.c.b16 %v991, %v990
      %v1003 = vpack.c.b16 %v993, %v992
      %v1004 = vpack.c.b16 %v995, %v994
      %v1005 = vpack.c.b16 %v997, %v996
      %1014 = vmatprep.subr.bf16.mxu0 0
      %1015 = vmatpush1.bf16.msra.mxu0 %v1005
      %1016 = vmatprep.subr.bf16.mxu0 0
      %1017 = vmatpush1.bf16.msra.mxu0 %v1004
      %1018 = vmatprep.subr.bf16.mxu0 0
      %1019 = vmatpush1.bf16.msra.mxu0 %v1003
      %1020 = vmatprep.subr.bf16.mxu0 0
      %1021 = vmatpush1.bf16.msra.mxu0 %v1002
      %1022 = vmatprep.subr.bf16.mxu0 0
      %1023 = vmatpush1.bf16.msra.mxu0 %v1001
      %1024 = vmatprep.subr.bf16.mxu0 0
      %1025 = vmatpush1.bf16.msra.mxu0 %v1000
      %1026 = vmatprep.subr.bf16.mxu0 0
      %1027 = vmatpush1.bf16.msra.mxu0 %v999
      %1028 = vmatprep.subr.bf16.mxu0 0
      %1029 = vmatpush1.bf16.msra.mxu0 %v998
      %1030 = vmatprep.subr.bf16.mxu0 0
      %1031 = vmatpush2.bf16.msra.mxu0 0
      %1032 = vmatprep.subr.bf16.mxu0 0
      %1033 = vmatpush2.bf16.msra.mxu0 0
      %1034 = vmatprep.subr.bf16.mxu0 0
      %1035 = vmatpush2.bf16.msra.mxu0 0
      %1036 = vmatprep.subr.bf16.mxu0 0
      %1037 = vmatpush2.bf16.msra.mxu0 0
      %1038 = vmatprep.subr.bf16.mxu0 0
      %1039 = vmatpush2.bf16.msra.mxu0 0
      %1040 = vmatprep.subr.bf16.mxu0 0
      %1041 = vmatpush2.bf16.msra.mxu0 0
      %1042 = vmatprep.subr.bf16.mxu0 0
      %1043 = vmatpush2.bf16.msra.mxu0 0
      %1044 = vmatprep.subr.bf16.mxu0 0
      %1045 = vmatpush2.bf16.msra.mxu0 0
      %1046 = vmatprep.mubr.bf16.mxu0 0
      %1047 = vmatmul.mubr.bf16.gmra.mxu0 %v958
      %v1048 = vpop.f32.mrf.mxu0
      %v1049 = vadd.f32 0.0, %v1048
      %v1050 = vpop.f32.mrf.mxu0
      %v1051 = vpop.f32.mrf.mxu0
      %v1052 = vadd.f32 0.0, %v1051
      %v1053 = vpop.f32.mrf.mxu0
      %1054 = vmatprep.mubr.bf16.mxu0 0
      %1055 = vmatmul.mubr.bf16.gmra.mxu0 %v959
      %v1056 = vpop.f32.mrf.mxu0
      %v1057 = vadd.f32 0.0, %v1056
      %v1058 = vpop.f32.mrf.mxu0
      %v1059 = vpop.f32.mrf.mxu0
      %v1060 = vadd.f32 0.0, %v1059
      %v1061 = vpop.f32.mrf.mxu0
      %1062 = vmatprep.mubr.bf16.mxu0 0
      %1063 = vmatmul.mubr.bf16.gmra.mxu0 %v960
      %v1064 = vpop.f32.mrf.mxu0
      %v1065 = vadd.f32 0.0, %v1064
      %v1066 = vpop.f32.mrf.mxu0
      %v1067 = vpop.f32.mrf.mxu0
      %v1068 = vadd.f32 0.0, %v1067
      %v1069 = vpop.f32.mrf.mxu0
      %1070 = vmatprep.mubr.bf16.mxu0 0
      %1071 = vmatmul.mubr.bf16.gmra.mxu0 %v961
      %v1072 = vpop.f32.mrf.mxu0
      %v1073 = vadd.f32 0.0, %v1072
      %v1074 = vpop.f32.mrf.mxu0
      %v1075 = vpop.f32.mrf.mxu0
      %v1076 = vadd.f32 0.0, %v1075
      %v1077 = vpop.f32.mrf.mxu0
      %1078 = vdwg.mxu0
      %v1079 = vadd.f32 %v908, %v1049
      %v1080 = vadd.f32 %v909, %v1052
      %v1081 = vadd.f32 %v910, %v1057
      %v1082 = vadd.f32 %v911, %v1060
      %v1083 = vadd.f32 %v912, %v1065
      %v1084 = vadd.f32 %v913, %v1068
      %v1085 = vadd.f32 %v914, %v1073
      %v1086 = vadd.f32 %v915, %v1076
      %v1087 = vld [vmem:[%s916] sm:$0xf]
      %v1088 = vld [vmem:[%s916 + $0x4] sm:$0x1]
      %v1089 = vld [vmem:[%s916 + $0x8] sm:$0xf]
      %v1090 = vld [vmem:[%s916 + $0xc] sm:$0x1]
      %v1091 = vld [vmem:[%s916 + $0x10] sm:$0xf]
      %v1092 = vld [vmem:[%s916 + $0x14] sm:$0x1]
      %v1093 = vld [vmem:[%s916 + $0x18] sm:$0xf]
      %v1094 = vld [vmem:[%s916 + $0x1c] sm:$0x1]
      %v1095 = vld [vmem:[%s916 + $0x20] sm:$0xf]
      %v1096 = vld [vmem:[%s916 + $0x24] sm:$0x1]
      %v1097 = vld [vmem:[%s916 + $0x28] sm:$0xf]
      %v1098 = vld [vmem:[%s916 + $0x2c] sm:$0x1]
      %v1099 = vld [vmem:[%s916 + $0x30] sm:$0xf]
      %v1100 = vld [vmem:[%s916 + $0x34] sm:$0x1]
      %v1101 = vld [vmem:[%s916 + $0x38] sm:$0xf]
      %v1102 = vld [vmem:[%s916 + $0x3c] sm:$0x1]
      %v1104 = vshrl.u32 %v1087, 16
      %v1106 = vrot.slane %v1104, 4
      %v1107 = vshll.u32 %v1087, 16
      %v1109 = vrot.slane %v1107, 5
      %v1110 = vor.u32 %v1106, %v1109
      %v1111 = vrot.slane %v1110, 4
      %v1113 = vshll.u32 %v1088, 16
      %v1115 = vrot.slane %v1113, 5
      %v1116 = vsel %vm307, %v1111, %v1115
      %v1118 = vshrl.u32 %v1089, 16
      %v1120 = vrot.slane %v1118, 4
      %v1121 = vshll.u32 %v1089, 16
      %v1123 = vrot.slane %v1121, 5
      %v1124 = vor.u32 %v1120, %v1123
      %v1125 = vrot.slane %v1124, 4
      %v1127 = vshll.u32 %v1090, 16
      %v1129 = vrot.slane %v1127, 5
      %v1130 = vsel %vm307, %v1125, %v1129
      %v1132 = vshrl.u32 %v1091, 16
      %v1134 = vrot.slane %v1132, 4
      %v1135 = vshll.u32 %v1091, 16
      %v1137 = vrot.slane %v1135, 5
      %v1138 = vor.u32 %v1134, %v1137
      %v1139 = vrot.slane %v1138, 4
      %v1141 = vshll.u32 %v1092, 16
      %v1143 = vrot.slane %v1141, 5
      %v1144 = vsel %vm307, %v1139, %v1143
      %v1146 = vshrl.u32 %v1093, 16
      %v1148 = vrot.slane %v1146, 4
      %v1149 = vshll.u32 %v1093, 16
      %v1151 = vrot.slane %v1149, 5
      %v1152 = vor.u32 %v1148, %v1151
      %v1153 = vrot.slane %v1152, 4
      %v1155 = vshll.u32 %v1094, 16
      %v1157 = vrot.slane %v1155, 5
      %v1158 = vsel %vm307, %v1153, %v1157
      %v1160 = vshrl.u32 %v1095, 16
      %v1162 = vrot.slane %v1160, 4
      %v1163 = vshll.u32 %v1095, 16
      %v1165 = vrot.slane %v1163, 5
      %v1166 = vor.u32 %v1162, %v1165
      %v1167 = vrot.slane %v1166, 4
      %v1169 = vshll.u32 %v1096, 16
      %v1171 = vrot.slane %v1169, 5
      %v1172 = vsel %vm307, %v1167, %v1171
      %v1174 = vshrl.u32 %v1097, 16
      %v1176 = vrot.slane %v1174, 4
      %v1177 = vshll.u32 %v1097, 16
      %v1179 = vrot.slane %v1177, 5
      %v1180 = vor.u32 %v1176, %v1179
      %v1181 = vrot.slane %v1180, 4
      %v1183 = vshll.u32 %v1098, 16
      %v1185 = vrot.slane %v1183, 5
      %v1186 = vsel %vm307, %v1181, %v1185
      %v1188 = vshrl.u32 %v1099, 16
      %v1190 = vrot.slane %v1188, 4
      %v1191 = vshll.u32 %v1099, 16
      %v1193 = vrot.slane %v1191, 5
      %v1194 = vor.u32 %v1190, %v1193
      %v1195 = vrot.slane %v1194, 4
      %v1197 = vshll.u32 %v1100, 16
      %v1199 = vrot.slane %v1197, 5
      %v1200 = vsel %vm307, %v1195, %v1199
      %v1202 = vshrl.u32 %v1101, 16
      %v1204 = vrot.slane %v1202, 4
      %v1205 = vshll.u32 %v1101, 16
      %v1207 = vrot.slane %v1205, 5
      %v1208 = vor.u32 %v1204, %v1207
      %v1209 = vrot.slane %v1208, 4
      %v1211 = vshll.u32 %v1102, 16
      %v1213 = vrot.slane %v1211, 5
      %v1214 = vsel %vm307, %v1209, %v1213
      %s1215 = scalar_lea.vmem %s1, 256
      %v1216 = vld [vmem:[%s1215] sm:$0xf]
      %v1217 = vld [vmem:[%s1215 + $0x4] sm:$0xf]
      %v1218 = vld [vmem:[%s1215 + $0x8] sm:$0xf]
      %v1219 = vld [vmem:[%s1215 + $0xc] sm:$0xf]
      %v1220 = vld [vmem:[%s1215 + $0x10] sm:$0xf]
      %v1221 = vld [vmem:[%s1215 + $0x14] sm:$0xf]
      %v1222 = vld [vmem:[%s1215 + $0x18] sm:$0xf]
      %v1223 = vld [vmem:[%s1215 + $0x1c] sm:$0xf]
      %v1224 = vld [vmem:[%s1215 + $0x20] sm:$0xf]
      %v1225 = vld [vmem:[%s1215 + $0x24] sm:$0xf]
      %v1226 = vld [vmem:[%s1215 + $0x28] sm:$0xf]
      %v1227 = vld [vmem:[%s1215 + $0x2c] sm:$0xf]
      %v1228 = vld [vmem:[%s1215 + $0x30] sm:$0xf]
      %v1229 = vld [vmem:[%s1215 + $0x34] sm:$0xf]
      %v1230 = vld [vmem:[%s1215 + $0x38] sm:$0xf]
      %v1231 = vld [vmem:[%s1215 + $0x3c] sm:$0xf]
      %v1232 = vunpack.c.l.b16 %v1116
      %v1233 = vunpack.c.l.b16 %v1130
      %v1234 = vunpack.c.l.b16 %v1144
      %v1235 = vunpack.c.l.b16 %v1158
      %v1236 = vunpack.c.l.b16 %v1172
      %v1237 = vunpack.c.l.b16 %v1186
      %v1238 = vunpack.c.l.b16 %v1200
      %v1239 = vunpack.c.l.b16 %v1214
      %v1240 = vpack.c.b16 %v1233, %v1232
      %v1241 = vpack.c.b16 %v1235, %v1234
      %v1242 = vpack.c.b16 %v1237, %v1236
      %v1243 = vpack.c.b16 %v1239, %v1238
      %v1264 = vunpack.c.l.b16 %v1216
      %v1265 = vunpack.c.l.b16 %v1217
      %v1266 = vunpack.c.l.b16 %v1218
      %v1267 = vunpack.c.l.b16 %v1219
      %v1268 = vunpack.c.l.b16 %v1220
      %v1269 = vunpack.c.l.b16 %v1221
      %v1270 = vunpack.c.l.b16 %v1222
      %v1271 = vunpack.c.l.b16 %v1223
      %v1272 = vunpack.c.l.b16 %v1224
      %v1273 = vunpack.c.l.b16 %v1225
      %v1274 = vunpack.c.l.b16 %v1226
      %v1275 = vunpack.c.l.b16 %v1227
      %v1276 = vunpack.c.l.b16 %v1228
      %v1277 = vunpack.c.l.b16 %v1229
      %v1278 = vunpack.c.l.b16 %v1230
      %v1279 = vunpack.c.l.b16 %v1231
      %v1280 = vpack.c.b16 %v1265, %v1264
      %v1281 = vpack.c.b16 %v1267, %v1266
      %v1282 = vpack.c.b16 %v1269, %v1268
      %v1283 = vpack.c.b16 %v1271, %v1270
      %v1284 = vpack.c.b16 %v1273, %v1272
      %v1285 = vpack.c.b16 %v1275, %v1274
      %v1286 = vpack.c.b16 %v1277, %v1276
      %v1287 = vpack.c.b16 %v1279, %v1278
      %1296 = vmatprep.subr.bf16.mxu0 0
      %1297 = vmatpush1.bf16.msra.mxu0 %v1287
      %1298 = vmatprep.subr.bf16.mxu0 0
      %1299 = vmatpush1.bf16.msra.mxu0 %v1286
      %1300 = vmatprep.subr.bf16.mxu0 0
      %1301 = vmatpush1.bf16.msra.mxu0 %v1285
      %1302 = vmatprep.subr.bf16.mxu0 0
      %1303 = vmatpush1.bf16.msra.mxu0 %v1284
      %1304 = vmatprep.subr.bf16.mxu0 0
      %1305 = vmatpush1.bf16.msra.mxu0 %v1283
      %1306 = vmatprep.subr.bf16.mxu0 0
      %1307 = vmatpush1.bf16.msra.mxu0 %v1282
      %1308 = vmatprep.subr.bf16.mxu0 0
      %1309 = vmatpush1.bf16.msra.mxu0 %v1281
      %1310 = vmatprep.subr.bf16.mxu0 0
      %1311 = vmatpush1.bf16.msra.mxu0 %v1280
      %1312 = vmatprep.subr.bf16.mxu0 0
      %1313 = vmatpush2.bf16.msra.mxu0 0
      %1314 = vmatprep.subr.bf16.mxu0 0
      %1315 = vmatpush2.bf16.msra.mxu0 0
      %1316 = vmatprep.subr.bf16.mxu0 0
      %1317 = vmatpush2.bf16.msra.mxu0 0
      %1318 = vmatprep.subr.bf16.mxu0 0
      %1319 = vmatpush2.bf16.msra.mxu0 0
      %1320 = vmatprep.subr.bf16.mxu0 0
      %1321 = vmatpush2.bf16.msra.mxu0 0
      %1322 = vmatprep.subr.bf16.mxu0 0
      %1323 = vmatpush2.bf16.msra.mxu0 0
      %1324 = vmatprep.subr.bf16.mxu0 0
      %1325 = vmatpush2.bf16.msra.mxu0 0
      %1326 = vmatprep.subr.bf16.mxu0 0
      %1327 = vmatpush2.bf16.msra.mxu0 0
      %1328 = vmatprep.mubr.bf16.mxu0 0
      %1329 = vmatmul.mubr.bf16.gmra.mxu0 %v1240
      %v1330 = vpop.f32.mrf.mxu0
      %v1331 = vadd.f32 0.0, %v1330
      %v1332 = vpop.f32.mrf.mxu0
      %v1333 = vpop.f32.mrf.mxu0
      %v1334 = vadd.f32 0.0, %v1333
      %v1335 = vpop.f32.mrf.mxu0
      %1336 = vmatprep.mubr.bf16.mxu0 0
      %1337 = vmatmul.mubr.bf16.gmra.mxu0 %v1241
      %v1338 = vpop.f32.mrf.mxu0
      %v1339 = vadd.f32 0.0, %v1338
      %v1340 = vpop.f32.mrf.mxu0
      %v1341 = vpop.f32.mrf.mxu0
      %v1342 = vadd.f32 0.0, %v1341
      %v1343 = vpop.f32.mrf.mxu0
      %1344 = vmatprep.mubr.bf16.mxu0 0
      %1345 = vmatmul.mubr.bf16.gmra.mxu0 %v1242
      %v1346 = vpop.f32.mrf.mxu0
      %v1347 = vadd.f32 0.0, %v1346
      %v1348 = vpop.f32.mrf.mxu0
      %v1349 = vpop.f32.mrf.mxu0
      %v1350 = vadd.f32 0.0, %v1349
      %v1351 = vpop.f32.mrf.mxu0
      %1352 = vmatprep.mubr.bf16.mxu0 0
      %1353 = vmatmul.mubr.bf16.gmra.mxu0 %v1243
      %v1354 = vpop.f32.mrf.mxu0
      %v1355 = vadd.f32 0.0, %v1354
      %v1356 = vpop.f32.mrf.mxu0
      %v1357 = vpop.f32.mrf.mxu0
      %v1358 = vadd.f32 0.0, %v1357
      %v1359 = vpop.f32.mrf.mxu0
      %1360 = vdwg.mxu0
      %v1361 = vadd.f32 %v1079, %v1331
      %v1362 = vadd.f32 %v1080, %v1334
      %v1363 = vadd.f32 %v1081, %v1339
      %v1364 = vadd.f32 %v1082, %v1342
      %v1365 = vadd.f32 %v1083, %v1347
      %v1366 = vadd.f32 %v1084, %v1350
      %v1367 = vadd.f32 %v1085, %v1355
      %v1368 = vadd.f32 %v1086, %v1358
      %v1369 = vld [vmem:[%s916] sm:$0xe]
      %v1370 = vld [vmem:[%s916 + $0x8] sm:$0xe]
      %v1371 = vld [vmem:[%s916 + $0x10] sm:$0xe]
      %v1372 = vld [vmem:[%s916 + $0x18] sm:$0xe]
      %v1373 = vld [vmem:[%s916 + $0x20] sm:$0xe]
      %v1374 = vld [vmem:[%s916 + $0x28] sm:$0xe]
      %v1375 = vld [vmem:[%s916 + $0x30] sm:$0xe]
      %v1376 = vld [vmem:[%s916 + $0x38] sm:$0xe]
      %v1393 = vrot.slane %v1369, 5
      %v1394 = vrot.slane %v1393, 4
      %v1395 = vrot.slane %v1088, 5
      %v1396 = vsel %vm729, %v1394, %v1395
      %v1397 = vrot.slane %v1370, 5
      %v1398 = vrot.slane %v1397, 4
      %v1399 = vrot.slane %v1090, 5
      %v1400 = vsel %vm729, %v1398, %v1399
      %v1401 = vrot.slane %v1371, 5
      %v1402 = vrot.slane %v1401, 4
      %v1403 = vrot.slane %v1092, 5
      %v1404 = vsel %vm729, %v1402, %v1403
      %v1405 = vrot.slane %v1372, 5
      %v1406 = vrot.slane %v1405, 4
      %v1407 = vrot.slane %v1094, 5
      %v1408 = vsel %vm729, %v1406, %v1407
      %v1409 = vrot.slane %v1373, 5
      %v1410 = vrot.slane %v1409, 4
      %v1411 = vrot.slane %v1096, 5
      %v1412 = vsel %vm729, %v1410, %v1411
      %v1413 = vrot.slane %v1374, 5
      %v1414 = vrot.slane %v1413, 4
      %v1415 = vrot.slane %v1098, 5
      %v1416 = vsel %vm729, %v1414, %v1415
      %v1417 = vrot.slane %v1375, 5
      %v1418 = vrot.slane %v1417, 4
      %v1419 = vrot.slane %v1100, 5
      %v1420 = vsel %vm729, %v1418, %v1419
      %v1421 = vrot.slane %v1376, 5
      %v1422 = vrot.slane %v1421, 4
      %v1423 = vrot.slane %v1102, 5
      %v1424 = vsel %vm729, %v1422, %v1423
      %s1425 = scalar_lea.vmem %s1, 320
      %v1426 = vld [vmem:[%s1425] sm:$0xf]
      %v1427 = vld [vmem:[%s1425 + $0x4] sm:$0xf]
      %v1428 = vld [vmem:[%s1425 + $0x8] sm:$0xf]
      %v1429 = vld [vmem:[%s1425 + $0xc] sm:$0xf]
      %v1430 = vld [vmem:[%s1425 + $0x10] sm:$0xf]
      %v1431 = vld [vmem:[%s1425 + $0x14] sm:$0xf]
      %v1432 = vld [vmem:[%s1425 + $0x18] sm:$0xf]
      %v1433 = vld [vmem:[%s1425 + $0x1c] sm:$0xf]
      %v1434 = vld [vmem:[%s1425 + $0x20] sm:$0xf]
      %v1435 = vld [vmem:[%s1425 + $0x24] sm:$0xf]
      %v1436 = vld [vmem:[%s1425 + $0x28] sm:$0xf]
      %v1437 = vld [vmem:[%s1425 + $0x2c] sm:$0xf]
      %v1438 = vld [vmem:[%s1425 + $0x30] sm:$0xf]
      %v1439 = vld [vmem:[%s1425 + $0x34] sm:$0xf]
      %v1440 = vld [vmem:[%s1425 + $0x38] sm:$0xf]
      %v1441 = vld [vmem:[%s1425 + $0x3c] sm:$0xf]
      %v1442 = vunpack.c.l.b16 %v1396
      %v1443 = vunpack.c.l.b16 %v1400
      %v1444 = vunpack.c.l.b16 %v1404
      %v1445 = vunpack.c.l.b16 %v1408
      %v1446 = vunpack.c.l.b16 %v1412
      %v1447 = vunpack.c.l.b16 %v1416
      %v1448 = vunpack.c.l.b16 %v1420
      %v1449 = vunpack.c.l.b16 %v1424
      %v1450 = vpack.c.b16 %v1443, %v1442
      %v1451 = vpack.c.b16 %v1445, %v1444
      %v1452 = vpack.c.b16 %v1447, %v1446
      %v1453 = vpack.c.b16 %v1449, %v1448
      %v1474 = vunpack.c.l.b16 %v1426
      %v1475 = vunpack.c.l.b16 %v1427
      %v1476 = vunpack.c.l.b16 %v1428
      %v1477 = vunpack.c.l.b16 %v1429
      %v1478 = vunpack.c.l.b16 %v1430
      %v1479 = vunpack.c.l.b16 %v1431
      %v1480 = vunpack.c.l.b16 %v1432
      %v1481 = vunpack.c.l.b16 %v1433
      %v1482 = vunpack.c.l.b16 %v1434
      %v1483 = vunpack.c.l.b16 %v1435
      %v1484 = vunpack.c.l.b16 %v1436
      %v1485 = vunpack.c.l.b16 %v1437
      %v1486 = vunpack.c.l.b16 %v1438
      %v1487 = vunpack.c.l.b16 %v1439
      %v1488 = vunpack.c.l.b16 %v1440
      %v1489 = vunpack.c.l.b16 %v1441
      %v1490 = vpack.c.b16 %v1475, %v1474
      %v1491 = vpack.c.b16 %v1477, %v1476
      %v1492 = vpack.c.b16 %v1479, %v1478
      %v1493 = vpack.c.b16 %v1481, %v1480
      %v1494 = vpack.c.b16 %v1483, %v1482
      %v1495 = vpack.c.b16 %v1485, %v1484
      %v1496 = vpack.c.b16 %v1487, %v1486
      %v1497 = vpack.c.b16 %v1489, %v1488
      %1506 = vmatprep.subr.bf16.mxu0 0
      %1507 = vmatpush1.bf16.msra.mxu0 %v1497
      %1508 = vmatprep.subr.bf16.mxu0 0
      %1509 = vmatpush1.bf16.msra.mxu0 %v1496
      %1510 = vmatprep.subr.bf16.mxu0 0
      %1511 = vmatpush1.bf16.msra.mxu0 %v1495
      %1512 = vmatprep.subr.bf16.mxu0 0
      %1513 = vmatpush1.bf16.msra.mxu0 %v1494
      %1514 = vmatprep.subr.bf16.mxu0 0
      %1515 = vmatpush1.bf16.msra.mxu0 %v1493
      %1516 = vmatprep.subr.bf16.mxu0 0
      %1517 = vmatpush1.bf16.msra.mxu0 %v1492
      %1518 = vmatprep.subr.bf16.mxu0 0
      %1519 = vmatpush1.bf16.msra.mxu0 %v1491
      %1520 = vmatprep.subr.bf16.mxu0 0
      %1521 = vmatpush1.bf16.msra.mxu0 %v1490
      %1522 = vmatprep.subr.bf16.mxu0 0
      %1523 = vmatpush2.bf16.msra.mxu0 0
      %1524 = vmatprep.subr.bf16.mxu0 0
      %1525 = vmatpush2.bf16.msra.mxu0 0
      %1526 = vmatprep.subr.bf16.mxu0 0
      %1527 = vmatpush2.bf16.msra.mxu0 0
      %1528 = vmatprep.subr.bf16.mxu0 0
      %1529 = vmatpush2.bf16.msra.mxu0 0
      %1530 = vmatprep.subr.bf16.mxu0 0
      %1531 = vmatpush2.bf16.msra.mxu0 0
      %1532 = vmatprep.subr.bf16.mxu0 0
      %1533 = vmatpush2.bf16.msra.mxu0 0
      %1534 = vmatprep.subr.bf16.mxu0 0
      %1535 = vmatpush2.bf16.msra.mxu0 0
      %1536 = vmatprep.subr.bf16.mxu0 0
      %1537 = vmatpush2.bf16.msra.mxu0 0
      %1538 = vmatprep.mubr.bf16.mxu0 0
      %1539 = vmatmul.mubr.bf16.gmra.mxu0 %v1450
      %v1540 = vpop.f32.mrf.mxu0
      %v1541 = vadd.f32 0.0, %v1540
      %v1542 = vpop.f32.mrf.mxu0
      %v1543 = vpop.f32.mrf.mxu0
      %v1544 = vadd.f32 0.0, %v1543
      %v1545 = vpop.f32.mrf.mxu0
      %1546 = vmatprep.mubr.bf16.mxu0 0
      %1547 = vmatmul.mubr.bf16.gmra.mxu0 %v1451
      %v1548 = vpop.f32.mrf.mxu0
      %v1549 = vadd.f32 0.0, %v1548
      %v1550 = vpop.f32.mrf.mxu0
      %v1551 = vpop.f32.mrf.mxu0
      %v1552 = vadd.f32 0.0, %v1551
      %v1553 = vpop.f32.mrf.mxu0
      %1554 = vmatprep.mubr.bf16.mxu0 0
      %1555 = vmatmul.mubr.bf16.gmra.mxu0 %v1452
      %v1556 = vpop.f32.mrf.mxu0
      %v1557 = vadd.f32 0.0, %v1556
      %v1558 = vpop.f32.mrf.mxu0
      %v1559 = vpop.f32.mrf.mxu0
      %v1560 = vadd.f32 0.0, %v1559
      %v1561 = vpop.f32.mrf.mxu0
      %1562 = vmatprep.mubr.bf16.mxu0 0
      %1563 = vmatmul.mubr.bf16.gmra.mxu0 %v1453
      %v1564 = vpop.f32.mrf.mxu0
      %v1565 = vadd.f32 0.0, %v1564
      %v1566 = vpop.f32.mrf.mxu0
      %v1567 = vpop.f32.mrf.mxu0
      %v1568 = vadd.f32 0.0, %v1567
      %v1569 = vpop.f32.mrf.mxu0
      %1570 = vdwg.mxu0
      %v1571 = vadd.f32 %v1361, %v1541
      %v1572 = vadd.f32 %v1362, %v1544
      %v1573 = vadd.f32 %v1363, %v1549
      %v1574 = vadd.f32 %v1364, %v1552
      %v1575 = vadd.f32 %v1365, %v1557
      %v1576 = vadd.f32 %v1366, %v1560
      %v1577 = vadd.f32 %v1367, %v1565
      %v1578 = vadd.f32 %v1368, %v1568
      %s1579 = scalar_lea.vmem %s261, 16
      %v1580 = vld [vmem:[%s1579] sm:$0xf]
      %v1581 = vld [vmem:[%s1579 + $0x8] sm:$0xf]
      %v1582 = vld [vmem:[%s1579 + $0x10] sm:$0xf]
      %v1583 = vld [vmem:[%s1579 + $0x18] sm:$0xf]
      %v1584 = vld [vmem:[%s1579 + $0x20] sm:$0xf]
      %v1585 = vld [vmem:[%s1579 + $0x28] sm:$0xf]
      %v1586 = vld [vmem:[%s1579 + $0x30] sm:$0xf]
      %v1587 = vld [vmem:[%s1579 + $0x38] sm:$0xf]
      %s1588 = scalar_lea.vmem %s1, 384
      %v1589 = vld [vmem:[%s1588] sm:$0xf]
      %v1590 = vld [vmem:[%s1588 + $0x4] sm:$0xf]
      %v1591 = vld [vmem:[%s1588 + $0x8] sm:$0xf]
      %v1592 = vld [vmem:[%s1588 + $0xc] sm:$0xf]
      %v1593 = vld [vmem:[%s1588 + $0x10] sm:$0xf]
      %v1594 = vld [vmem:[%s1588 + $0x14] sm:$0xf]
      %v1595 = vld [vmem:[%s1588 + $0x18] sm:$0xf]
      %v1596 = vld [vmem:[%s1588 + $0x1c] sm:$0xf]
      %v1597 = vld [vmem:[%s1588 + $0x20] sm:$0xf]
      %v1598 = vld [vmem:[%s1588 + $0x24] sm:$0xf]
      %v1599 = vld [vmem:[%s1588 + $0x28] sm:$0xf]
      %v1600 = vld [vmem:[%s1588 + $0x2c] sm:$0xf]
      %v1601 = vld [vmem:[%s1588 + $0x30] sm:$0xf]
      %v1602 = vld [vmem:[%s1588 + $0x34] sm:$0xf]
      %v1603 = vld [vmem:[%s1588 + $0x38] sm:$0xf]
      %v1604 = vld [vmem:[%s1588 + $0x3c] sm:$0xf]
      %v1613 = vunpack.c.l.b16 %v1580
      %v1614 = vunpack.c.l.b16 %v1581
      %v1615 = vunpack.c.l.b16 %v1582
      %v1616 = vunpack.c.l.b16 %v1583
      %v1617 = vunpack.c.l.b16 %v1584
      %v1618 = vunpack.c.l.b16 %v1585
      %v1619 = vunpack.c.l.b16 %v1586
      %v1620 = vunpack.c.l.b16 %v1587
      %v1621 = vpack.c.b16 %v1614, %v1613
      %v1622 = vpack.c.b16 %v1616, %v1615
      %v1623 = vpack.c.b16 %v1618, %v1617
      %v1624 = vpack.c.b16 %v1620, %v1619
      %v1645 = vunpack.c.l.b16 %v1589
      %v1646 = vunpack.c.l.b16 %v1590
      %v1647 = vunpack.c.l.b16 %v1591
      %v1648 = vunpack.c.l.b16 %v1592
      %v1649 = vunpack.c.l.b16 %v1593
      %v1650 = vunpack.c.l.b16 %v1594
      %v1651 = vunpack.c.l.b16 %v1595
      %v1652 = vunpack.c.l.b16 %v1596
      %v1653 = vunpack.c.l.b16 %v1597
      %v1654 = vunpack.c.l.b16 %v1598
      %v1655 = vunpack.c.l.b16 %v1599
      %v1656 = vunpack.c.l.b16 %v1600
      %v1657 = vunpack.c.l.b16 %v1601
      %v1658 = vunpack.c.l.b16 %v1602
      %v1659 = vunpack.c.l.b16 %v1603
      %v1660 = vunpack.c.l.b16 %v1604
      %v1661 = vpack.c.b16 %v1646, %v1645
      %v1662 = vpack.c.b16 %v1648, %v1647
      %v1663 = vpack.c.b16 %v1650, %v1649
      %v1664 = vpack.c.b16 %v1652, %v1651
      %v1665 = vpack.c.b16 %v1654, %v1653
      %v1666 = vpack.c.b16 %v1656, %v1655
      %v1667 = vpack.c.b16 %v1658, %v1657
      %v1668 = vpack.c.b16 %v1660, %v1659
      %1677 = vmatprep.subr.bf16.mxu0 0
      %1678 = vmatpush1.bf16.msra.mxu0 %v1668
      %1679 = vmatprep.subr.bf16.mxu0 0
      %1680 = vmatpush1.bf16.msra.mxu0 %v1667
      %1681 = vmatprep.subr.bf16.mxu0 0
      %1682 = vmatpush1.bf16.msra.mxu0 %v1666
      %1683 = vmatprep.subr.bf16.mxu0 0
      %1684 = vmatpush1.bf16.msra.mxu0 %v1665
      %1685 = vmatprep.subr.bf16.mxu0 0
      %1686 = vmatpush1.bf16.msra.mxu0 %v1664
      %1687 = vmatprep.subr.bf16.mxu0 0
      %1688 = vmatpush1.bf16.msra.mxu0 %v1663
      %1689 = vmatprep.subr.bf16.mxu0 0
      %1690 = vmatpush1.bf16.msra.mxu0 %v1662
      %1691 = vmatprep.subr.bf16.mxu0 0
      %1692 = vmatpush1.bf16.msra.mxu0 %v1661
      %1693 = vmatprep.subr.bf16.mxu0 0
      %1694 = vmatpush2.bf16.msra.mxu0 0
      %1695 = vmatprep.subr.bf16.mxu0 0
      %1696 = vmatpush2.bf16.msra.mxu0 0
      %1697 = vmatprep.subr.bf16.mxu0 0
      %1698 = vmatpush2.bf16.msra.mxu0 0
      %1699 = vmatprep.subr.bf16.mxu0 0
      %1700 = vmatpush2.bf16.msra.mxu0 0
      %1701 = vmatprep.subr.bf16.mxu0 0
      %1702 = vmatpush2.bf16.msra.mxu0 0
      %1703 = vmatprep.subr.bf16.mxu0 0
      %1704 = vmatpush2.bf16.msra.mxu0 0
      %1705 = vmatprep.subr.bf16.mxu0 0
      %1706 = vmatpush2.bf16.msra.mxu0 0
      %1707 = vmatprep.subr.bf16.mxu0 0
      %1708 = vmatpush2.bf16.msra.mxu0 0
      %1709 = vmatprep.mubr.bf16.mxu0 0
      %1710 = vmatmul.mubr.bf16.gmra.mxu0 %v1621
      %v1711 = vpop.f32.mrf.mxu0
      %v1712 = vadd.f32 0.0, %v1711
      %v1713 = vpop.f32.mrf.mxu0
      %v1714 = vpop.f32.mrf.mxu0
      %v1715 = vadd.f32 0.0, %v1714
      %v1716 = vpop.f32.mrf.mxu0
      %1717 = vmatprep.mubr.bf16.mxu0 0
      %1718 = vmatmul.mubr.bf16.gmra.mxu0 %v1622
      %v1719 = vpop.f32.mrf.mxu0
      %v1720 = vadd.f32 0.0, %v1719
      %v1721 = vpop.f32.mrf.mxu0
      %v1722 = vpop.f32.mrf.mxu0
      %v1723 = vadd.f32 0.0, %v1722
      %v1724 = vpop.f32.mrf.mxu0
      %1725 = vmatprep.mubr.bf16.mxu0 0
      %1726 = vmatmul.mubr.bf16.gmra.mxu0 %v1623
      %v1727 = vpop.f32.mrf.mxu0
      %v1728 = vadd.f32 0.0, %v1727
      %v1729 = vpop.f32.mrf.mxu0
      %v1730 = vpop.f32.mrf.mxu0
      %v1731 = vadd.f32 0.0, %v1730
      %v1732 = vpop.f32.mrf.mxu0
      %1733 = vmatprep.mubr.bf16.mxu0 0
      %1734 = vmatmul.mubr.bf16.gmra.mxu0 %v1624
      %v1735 = vpop.f32.mrf.mxu0
      %v1736 = vadd.f32 0.0, %v1735
      %v1737 = vpop.f32.mrf.mxu0
      %v1738 = vpop.f32.mrf.mxu0
      %v1739 = vadd.f32 0.0, %v1738
      %v1740 = vpop.f32.mrf.mxu0
      %1741 = vdwg.mxu0
      %v1742 = vadd.f32 %v1571, %v1712
      %v1743 = vadd.f32 %v1572, %v1715
      %v1744 = vadd.f32 %v1573, %v1720
      %v1745 = vadd.f32 %v1574, %v1723
      %v1746 = vadd.f32 %v1575, %v1728
      %v1747 = vadd.f32 %v1576, %v1731
      %v1748 = vadd.f32 %v1577, %v1736
      %v1749 = vadd.f32 %v1578, %v1739
      %v1750 = vld [vmem:[%s1579] sm:$0xf]
      %v1751 = vld [vmem:[%s1579 + $0x4] sm:$0x1]
      %v1752 = vld [vmem:[%s1579 + $0x8] sm:$0xf]
      %v1753 = vld [vmem:[%s1579 + $0xc] sm:$0x1]
      %v1754 = vld [vmem:[%s1579 + $0x10] sm:$0xf]
      %v1755 = vld [vmem:[%s1579 + $0x14] sm:$0x1]
      %v1756 = vld [vmem:[%s1579 + $0x18] sm:$0xf]
      %v1757 = vld [vmem:[%s1579 + $0x1c] sm:$0x1]
      %v1758 = vld [vmem:[%s1579 + $0x20] sm:$0xf]
      %v1759 = vld [vmem:[%s1579 + $0x24] sm:$0x1]
      %v1760 = vld [vmem:[%s1579 + $0x28] sm:$0xf]
      %v1761 = vld [vmem:[%s1579 + $0x2c] sm:$0x1]
      %v1762 = vld [vmem:[%s1579 + $0x30] sm:$0xf]
      %v1763 = vld [vmem:[%s1579 + $0x34] sm:$0x1]
      %v1764 = vld [vmem:[%s1579 + $0x38] sm:$0xf]
      %v1765 = vld [vmem:[%s1579 + $0x3c] sm:$0x1]
      %v1767 = vshrl.u32 %v1750, 16
      %v1769 = vrot.slane %v1767, 4
      %v1770 = vshll.u32 %v1750, 16
      %v1772 = vrot.slane %v1770, 5
      %v1773 = vor.u32 %v1769, %v1772
      %v1774 = vrot.slane %v1773, 4
      %v1776 = vshll.u32 %v1751, 16
      %v1778 = vrot.slane %v1776, 5
      %v1779 = vsel %vm307, %v1774, %v1778
      %v1781 = vshrl.u32 %v1752, 16
      %v1783 = vrot.slane %v1781, 4
      %v1784 = vshll.u32 %v1752, 16
      %v1786 = vrot.slane %v1784, 5
      %v1787 = vor.u32 %v1783, %v1786
      %v1788 = vrot.slane %v1787, 4
      %v1790 = vshll.u32 %v1753, 16
      %v1792 = vrot.slane %v1790, 5
      %v1793 = vsel %vm307, %v1788, %v1792
      %v1795 = vshrl.u32 %v1754, 16
      %v1797 = vrot.slane %v1795, 4
      %v1798 = vshll.u32 %v1754, 16
      %v1800 = vrot.slane %v1798, 5
      %v1801 = vor.u32 %v1797, %v1800
      %v1802 = vrot.slane %v1801, 4
      %v1804 = vshll.u32 %v1755, 16
      %v1806 = vrot.slane %v1804, 5
      %v1807 = vsel %vm307, %v1802, %v1806
      %v1809 = vshrl.u32 %v1756, 16
      %v1811 = vrot.slane %v1809, 4
      %v1812 = vshll.u32 %v1756, 16
      %v1814 = vrot.slane %v1812, 5
      %v1815 = vor.u32 %v1811, %v1814
      %v1816 = vrot.slane %v1815, 4
      %v1818 = vshll.u32 %v1757, 16
      %v1820 = vrot.slane %v1818, 5
      %v1821 = vsel %vm307, %v1816, %v1820
      %v1823 = vshrl.u32 %v1758, 16
      %v1825 = vrot.slane %v1823, 4
      %v1826 = vshll.u32 %v1758, 16
      %v1828 = vrot.slane %v1826, 5
      %v1829 = vor.u32 %v1825, %v1828
      %v1830 = vrot.slane %v1829, 4
      %v1832 = vshll.u32 %v1759, 16
      %v1834 = vrot.slane %v1832, 5
      %v1835 = vsel %vm307, %v1830, %v1834
      %v1837 = vshrl.u32 %v1760, 16
      %v1839 = vrot.slane %v1837, 4
      %v1840 = vshll.u32 %v1760, 16
      %v1842 = vrot.slane %v1840, 5
      %v1843 = vor.u32 %v1839, %v1842
      %v1844 = vrot.slane %v1843, 4
      %v1846 = vshll.u32 %v1761, 16
      %v1848 = vrot.slane %v1846, 5
      %v1849 = vsel %vm307, %v1844, %v1848
      %v1851 = vshrl.u32 %v1762, 16
      %v1853 = vrot.slane %v1851, 4
      %v1854 = vshll.u32 %v1762, 16
      %v1856 = vrot.slane %v1854, 5
      %v1857 = vor.u32 %v1853, %v1856
      %v1858 = vrot.slane %v1857, 4
      %v1860 = vshll.u32 %v1763, 16
      %v1862 = vrot.slane %v1860, 5
      %v1863 = vsel %vm307, %v1858, %v1862
      %v1865 = vshrl.u32 %v1764, 16
      %v1867 = vrot.slane %v1865, 4
      %v1868 = vshll.u32 %v1764, 16
      %v1870 = vrot.slane %v1868, 5
      %v1871 = vor.u32 %v1867, %v1870
      %v1872 = vrot.slane %v1871, 4
      %v1874 = vshll.u32 %v1765, 16
      %v1876 = vrot.slane %v1874, 5
      %v1877 = vsel %vm307, %v1872, %v1876
      %s1878 = scalar_lea.vmem %s1, 448
      %v1879 = vld [vmem:[%s1878] sm:$0xf]
      %v1880 = vld [vmem:[%s1878 + $0x4] sm:$0xf]
      %v1881 = vld [vmem:[%s1878 + $0x8] sm:$0xf]
      %v1882 = vld [vmem:[%s1878 + $0xc] sm:$0xf]
      %v1883 = vld [vmem:[%s1878 + $0x10] sm:$0xf]
      %v1884 = vld [vmem:[%s1878 + $0x14] sm:$0xf]
      %v1885 = vld [vmem:[%s1878 + $0x18] sm:$0xf]
      %v1886 = vld [vmem:[%s1878 + $0x1c] sm:$0xf]
      %v1887 = vld [vmem:[%s1878 + $0x20] sm:$0xf]
      %v1888 = vld [vmem:[%s1878 + $0x24] sm:$0xf]
      %v1889 = vld [vmem:[%s1878 + $0x28] sm:$0xf]
      %v1890 = vld [vmem:[%s1878 + $0x2c] sm:$0xf]
      %v1891 = vld [vmem:[%s1878 + $0x30] sm:$0xf]
      %v1892 = vld [vmem:[%s1878 + $0x34] sm:$0xf]
      %v1893 = vld [vmem:[%s1878 + $0x38] sm:$0xf]
      %v1894 = vld [vmem:[%s1878 + $0x3c] sm:$0xf]
      %v1895 = vunpack.c.l.b16 %v1779
      %v1896 = vunpack.c.l.b16 %v1793
      %v1897 = vunpack.c.l.b16 %v1807
      %v1898 = vunpack.c.l.b16 %v1821
      %v1899 = vunpack.c.l.b16 %v1835
      %v1900 = vunpack.c.l.b16 %v1849
      %v1901 = vunpack.c.l.b16 %v1863
      %v1902 = vunpack.c.l.b16 %v1877
      %v1903 = vpack.c.b16 %v1896, %v1895
      %v1904 = vpack.c.b16 %v1898, %v1897
      %v1905 = vpack.c.b16 %v1900, %v1899
      %v1906 = vpack.c.b16 %v1902, %v1901
      %v1927 = vunpack.c.l.b16 %v1879
      %v1928 = vunpack.c.l.b16 %v1880
      %v1929 = vunpack.c.l.b16 %v1881
      %v1930 = vunpack.c.l.b16 %v1882
      %v1931 = vunpack.c.l.b16 %v1883
      %v1932 = vunpack.c.l.b16 %v1884
      %v1933 = vunpack.c.l.b16 %v1885
      %v1934 = vunpack.c.l.b16 %v1886
      %v1935 = vunpack.c.l.b16 %v1887
      %v1936 = vunpack.c.l.b16 %v1888
      %v1937 = vunpack.c.l.b16 %v1889
      %v1938 = vunpack.c.l.b16 %v1890
      %v1939 = vunpack.c.l.b16 %v1891
      %v1940 = vunpack.c.l.b16 %v1892
      %v1941 = vunpack.c.l.b16 %v1893
      %v1942 = vunpack.c.l.b16 %v1894
      %v1943 = vpack.c.b16 %v1928, %v1927
      %v1944 = vpack.c.b16 %v1930, %v1929
      %v1945 = vpack.c.b16 %v1932, %v1931
      %v1946 = vpack.c.b16 %v1934, %v1933
      %v1947 = vpack.c.b16 %v1936, %v1935
      %v1948 = vpack.c.b16 %v1938, %v1937
      %v1949 = vpack.c.b16 %v1940, %v1939
      %v1950 = vpack.c.b16 %v1942, %v1941
      %1959 = vmatprep.subr.bf16.mxu0 0
      %1960 = vmatpush1.bf16.msra.mxu0 %v1950
      %1961 = vmatprep.subr.bf16.mxu0 0
      %1962 = vmatpush1.bf16.msra.mxu0 %v1949
      %1963 = vmatprep.subr.bf16.mxu0 0
      %1964 = vmatpush1.bf16.msra.mxu0 %v1948
      %1965 = vmatprep.subr.bf16.mxu0 0
      %1966 = vmatpush1.bf16.msra.mxu0 %v1947
      %1967 = vmatprep.subr.bf16.mxu0 0
      %1968 = vmatpush1.bf16.msra.mxu0 %v1946
      %1969 = vmatprep.subr.bf16.mxu0 0
      %1970 = vmatpush1.bf16.msra.mxu0 %v1945
      %1971 = vmatprep.subr.bf16.mxu0 0
      %1972 = vmatpush1.bf16.msra.mxu0 %v1944
      %1973 = vmatprep.subr.bf16.mxu0 0
      %1974 = vmatpush1.bf16.msra.mxu0 %v1943
      %1975 = vmatprep.subr.bf16.mxu0 0
      %1976 = vmatpush2.bf16.msra.mxu0 0
      %1977 = vmatprep.subr.bf16.mxu0 0
      %1978 = vmatpush2.bf16.msra.mxu0 0
      %1979 = vmatprep.subr.bf16.mxu0 0
      %1980 = vmatpush2.bf16.msra.mxu0 0
      %1981 = vmatprep.subr.bf16.mxu0 0
      %1982 = vmatpush2.bf16.msra.mxu0 0
      %1983 = vmatprep.subr.bf16.mxu0 0
      %1984 = vmatpush2.bf16.msra.mxu0 0
      %1985 = vmatprep.subr.bf16.mxu0 0
      %1986 = vmatpush2.bf16.msra.mxu0 0
      %1987 = vmatprep.subr.bf16.mxu0 0
      %1988 = vmatpush2.bf16.msra.mxu0 0
      %1989 = vmatprep.subr.bf16.mxu0 0
      %1990 = vmatpush2.bf16.msra.mxu0 0
      %1991 = vmatprep.mubr.bf16.mxu0 0
      %1992 = vmatmul.mubr.bf16.gmra.mxu0 %v1903
      %v1993 = vpop.f32.mrf.mxu0
      %v1994 = vadd.f32 0.0, %v1993
      %v1995 = vpop.f32.mrf.mxu0
      %v1996 = vpop.f32.mrf.mxu0
      %v1997 = vadd.f32 0.0, %v1996
      %v1998 = vpop.f32.mrf.mxu0
      %1999 = vmatprep.mubr.bf16.mxu0 0
      %2000 = vmatmul.mubr.bf16.gmra.mxu0 %v1904
      %v2001 = vpop.f32.mrf.mxu0
      %v2002 = vadd.f32 0.0, %v2001
      %v2003 = vpop.f32.mrf.mxu0
      %v2004 = vpop.f32.mrf.mxu0
      %v2005 = vadd.f32 0.0, %v2004
      %v2006 = vpop.f32.mrf.mxu0
      %2007 = vmatprep.mubr.bf16.mxu0 0
      %2008 = vmatmul.mubr.bf16.gmra.mxu0 %v1905
      %v2009 = vpop.f32.mrf.mxu0
      %v2010 = vadd.f32 0.0, %v2009
      %v2011 = vpop.f32.mrf.mxu0
      %v2012 = vpop.f32.mrf.mxu0
      %v2013 = vadd.f32 0.0, %v2012
      %v2014 = vpop.f32.mrf.mxu0
      %2015 = vmatprep.mubr.bf16.mxu0 0
      %2016 = vmatmul.mubr.bf16.gmra.mxu0 %v1906
      %v2017 = vpop.f32.mrf.mxu0
      %v2018 = vadd.f32 0.0, %v2017
      %v2019 = vpop.f32.mrf.mxu0
      %v2020 = vpop.f32.mrf.mxu0
      %v2021 = vadd.f32 0.0, %v2020
      %v2022 = vpop.f32.mrf.mxu0
      %2023 = vdwg.mxu0
      %v2024 = vadd.f32 %v1742, %v1994
      %v2025 = vadd.f32 %v1743, %v1997
      %v2026 = vadd.f32 %v1744, %v2002
      %v2027 = vadd.f32 %v1745, %v2005
      %v2028 = vadd.f32 %v1746, %v2010
      %v2029 = vadd.f32 %v1747, %v2013
      %v2030 = vadd.f32 %v1748, %v2018
      %v2031 = vadd.f32 %v1749, %v2021
      %v2032 = vld [vmem:[%s1579] sm:$0xe]
      %v2033 = vld [vmem:[%s1579 + $0x8] sm:$0xe]
      %v2034 = vld [vmem:[%s1579 + $0x10] sm:$0xe]
      %v2035 = vld [vmem:[%s1579 + $0x18] sm:$0xe]
      %v2036 = vld [vmem:[%s1579 + $0x20] sm:$0xe]
      %v2037 = vld [vmem:[%s1579 + $0x28] sm:$0xe]
      %v2038 = vld [vmem:[%s1579 + $0x30] sm:$0xe]
      %v2039 = vld [vmem:[%s1579 + $0x38] sm:$0xe]
      %v2056 = vrot.slane %v2032, 5
      %v2057 = vrot.slane %v2056, 4
      %v2058 = vrot.slane %v1751, 5
      %v2059 = vsel %vm729, %v2057, %v2058
      %v2060 = vrot.slane %v2033, 5
      %v2061 = vrot.slane %v2060, 4
      %v2062 = vrot.slane %v1753, 5
      %v2063 = vsel %vm729, %v2061, %v2062
      %v2064 = vrot.slane %v2034, 5
      %v2065 = vrot.slane %v2064, 4
      %v2066 = vrot.slane %v1755, 5
      %v2067 = vsel %vm729, %v2065, %v2066
      %v2068 = vrot.slane %v2035, 5
      %v2069 = vrot.slane %v2068, 4
      %v2070 = vrot.slane %v1757, 5
      %v2071 = vsel %vm729, %v2069, %v2070
      %v2072 = vrot.slane %v2036, 5
      %v2073 = vrot.slane %v2072, 4
      %v2074 = vrot.slane %v1759, 5
      %v2075 = vsel %vm729, %v2073, %v2074
      %v2076 = vrot.slane %v2037, 5
      %v2077 = vrot.slane %v2076, 4
      %v2078 = vrot.slane %v1761, 5
      %v2079 = vsel %vm729, %v2077, %v2078
      %v2080 = vrot.slane %v2038, 5
      %v2081 = vrot.slane %v2080, 4
      %v2082 = vrot.slane %v1763, 5
      %v2083 = vsel %vm729, %v2081, %v2082
      %v2084 = vrot.slane %v2039, 5
      %v2085 = vrot.slane %v2084, 4
      %v2086 = vrot.slane %v1765, 5
      %v2087 = vsel %vm729, %v2085, %v2086
      %s2088 = scalar_lea.vmem %s1, 512
      %v2089 = vld [vmem:[%s2088] sm:$0xf]
      %v2090 = vld [vmem:[%s2088 + $0x4] sm:$0xf]
      %v2091 = vld [vmem:[%s2088 + $0x8] sm:$0xf]
      %v2092 = vld [vmem:[%s2088 + $0xc] sm:$0xf]
      %v2093 = vld [vmem:[%s2088 + $0x10] sm:$0xf]
      %v2094 = vld [vmem:[%s2088 + $0x14] sm:$0xf]
      %v2095 = vld [vmem:[%s2088 + $0x18] sm:$0xf]
      %v2096 = vld [vmem:[%s2088 + $0x1c] sm:$0xf]
      %v2097 = vld [vmem:[%s2088 + $0x20] sm:$0xf]
      %v2098 = vld [vmem:[%s2088 + $0x24] sm:$0xf]
      %v2099 = vld [vmem:[%s2088 + $0x28] sm:$0xf]
      %v2100 = vld [vmem:[%s2088 + $0x2c] sm:$0xf]
      %v2101 = vld [vmem:[%s2088 + $0x30] sm:$0xf]
      %v2102 = vld [vmem:[%s2088 + $0x34] sm:$0xf]
      %v2103 = vld [vmem:[%s2088 + $0x38] sm:$0xf]
      %v2104 = vld [vmem:[%s2088 + $0x3c] sm:$0xf]
      %v2105 = vunpack.c.l.b16 %v2059
      %v2106 = vunpack.c.l.b16 %v2063
      %v2107 = vunpack.c.l.b16 %v2067
      %v2108 = vunpack.c.l.b16 %v2071
      %v2109 = vunpack.c.l.b16 %v2075
      %v2110 = vunpack.c.l.b16 %v2079
      %v2111 = vunpack.c.l.b16 %v2083
      %v2112 = vunpack.c.l.b16 %v2087
      %v2113 = vpack.c.b16 %v2106, %v2105
      %v2114 = vpack.c.b16 %v2108, %v2107
      %v2115 = vpack.c.b16 %v2110, %v2109
      %v2116 = vpack.c.b16 %v2112, %v2111
      %v2137 = vunpack.c.l.b16 %v2089
      %v2138 = vunpack.c.l.b16 %v2090
      %v2139 = vunpack.c.l.b16 %v2091
      %v2140 = vunpack.c.l.b16 %v2092
      %v2141 = vunpack.c.l.b16 %v2093
      %v2142 = vunpack.c.l.b16 %v2094
      %v2143 = vunpack.c.l.b16 %v2095
      %v2144 = vunpack.c.l.b16 %v2096
      %v2145 = vunpack.c.l.b16 %v2097
      %v2146 = vunpack.c.l.b16 %v2098
      %v2147 = vunpack.c.l.b16 %v2099
      %v2148 = vunpack.c.l.b16 %v2100
      %v2149 = vunpack.c.l.b16 %v2101
      %v2150 = vunpack.c.l.b16 %v2102
      %v2151 = vunpack.c.l.b16 %v2103
      %v2152 = vunpack.c.l.b16 %v2104
      %v2153 = vpack.c.b16 %v2138, %v2137
      %v2154 = vpack.c.b16 %v2140, %v2139
      %v2155 = vpack.c.b16 %v2142, %v2141
      %v2156 = vpack.c.b16 %v2144, %v2143
      %v2157 = vpack.c.b16 %v2146, %v2145
      %v2158 = vpack.c.b16 %v2148, %v2147
      %v2159 = vpack.c.b16 %v2150, %v2149
      %v2160 = vpack.c.b16 %v2152, %v2151
      %2169 = vmatprep.subr.bf16.mxu0 0
      %2170 = vmatpush1.bf16.msra.mxu0 %v2160
      %2171 = vmatprep.subr.bf16.mxu0 0
      %2172 = vmatpush1.bf16.msra.mxu0 %v2159
      %2173 = vmatprep.subr.bf16.mxu0 0
      %2174 = vmatpush1.bf16.msra.mxu0 %v2158
      %2175 = vmatprep.subr.bf16.mxu0 0
      %2176 = vmatpush1.bf16.msra.mxu0 %v2157
      %2177 = vmatprep.subr.bf16.mxu0 0
      %2178 = vmatpush1.bf16.msra.mxu0 %v2156
      %2179 = vmatprep.subr.bf16.mxu0 0
      %2180 = vmatpush1.bf16.msra.mxu0 %v2155
      %2181 = vmatprep.subr.bf16.mxu0 0
      %2182 = vmatpush1.bf16.msra.mxu0 %v2154
      %2183 = vmatprep.subr.bf16.mxu0 0
      %2184 = vmatpush1.bf16.msra.mxu0 %v2153
      %2185 = vmatprep.subr.bf16.mxu0 0
      %2186 = vmatpush2.bf16.msra.mxu0 0
      %2187 = vmatprep.subr.bf16.mxu0 0
      %2188 = vmatpush2.bf16.msra.mxu0 0
      %2189 = vmatprep.subr.bf16.mxu0 0
      %2190 = vmatpush2.bf16.msra.mxu0 0
      %2191 = vmatprep.subr.bf16.mxu0 0
      %2192 = vmatpush2.bf16.msra.mxu0 0
      %2193 = vmatprep.subr.bf16.mxu0 0
      %2194 = vmatpush2.bf16.msra.mxu0 0
      %2195 = vmatprep.subr.bf16.mxu0 0
      %2196 = vmatpush2.bf16.msra.mxu0 0
      %2197 = vmatprep.subr.bf16.mxu0 0
      %2198 = vmatpush2.bf16.msra.mxu0 0
      %2199 = vmatprep.subr.bf16.mxu0 0
      %2200 = vmatpush2.bf16.msra.mxu0 0
      %2201 = vmatprep.mubr.bf16.mxu0 0
      %2202 = vmatmul.mubr.bf16.gmra.mxu0 %v2113
      %v2203 = vpop.f32.mrf.mxu0
      %v2204 = vadd.f32 0.0, %v2203
      %v2205 = vpop.f32.mrf.mxu0
      %v2206 = vpop.f32.mrf.mxu0
      %v2207 = vadd.f32 0.0, %v2206
      %v2208 = vpop.f32.mrf.mxu0
      %2209 = vmatprep.mubr.bf16.mxu0 0
      %2210 = vmatmul.mubr.bf16.gmra.mxu0 %v2114
      %v2211 = vpop.f32.mrf.mxu0
      %v2212 = vadd.f32 0.0, %v2211
      %v2213 = vpop.f32.mrf.mxu0
      %v2214 = vpop.f32.mrf.mxu0
      %v2215 = vadd.f32 0.0, %v2214
      %v2216 = vpop.f32.mrf.mxu0
      %2217 = vmatprep.mubr.bf16.mxu0 0
      %2218 = vmatmul.mubr.bf16.gmra.mxu0 %v2115
      %v2219 = vpop.f32.mrf.mxu0
      %v2220 = vadd.f32 0.0, %v2219
      %v2221 = vpop.f32.mrf.mxu0
      %v2222 = vpop.f32.mrf.mxu0
      %v2223 = vadd.f32 0.0, %v2222
      %v2224 = vpop.f32.mrf.mxu0
      %2225 = vmatprep.mubr.bf16.mxu0 0
      %2226 = vmatmul.mubr.bf16.gmra.mxu0 %v2116
      %v2227 = vpop.f32.mrf.mxu0
      %v2228 = vadd.f32 0.0, %v2227
      %v2229 = vpop.f32.mrf.mxu0
      %v2230 = vpop.f32.mrf.mxu0
      %v2231 = vadd.f32 0.0, %v2230
      %v2232 = vpop.f32.mrf.mxu0
      %2233 = vdwg.mxu0
      %v2234 = vadd.f32 %v2024, %v2204
      %v2235 = vadd.f32 %v2025, %v2207
      %v2236 = vadd.f32 %v2026, %v2212
      %v2237 = vadd.f32 %v2027, %v2215
      %v2238 = vadd.f32 %v2028, %v2220
      %v2239 = vadd.f32 %v2029, %v2223
      %v2240 = vadd.f32 %v2030, %v2228
      %v2241 = vadd.f32 %v2031, %v2231
      %v2242 = vld [vmem:[%s266] sm:$0xf]
      %v2243 = vld [vmem:[%s266 + $0x4] sm:$0xf]
      %v2244 = vld [vmem:[%s266 + $0x8] sm:$0xf]
      %v2245 = vld [vmem:[%s266 + $0xc] sm:$0xf]
      %v2246 = vld [vmem:[%s266 + $0x10] sm:$0xf]
      %v2247 = vld [vmem:[%s266 + $0x14] sm:$0xf]
      %v2248 = vld [vmem:[%s266 + $0x18] sm:$0xf]
      %v2249 = vld [vmem:[%s266 + $0x1c] sm:$0xf]
      %v2250 = vld [vmem:[%s4] sm:$0xf]
      %v2251 = vld [vmem:[%s4 + $0x4] sm:$0xf]
      %v2252 = vld [vmem:[%s4 + $0x8] sm:$0xf]
      %v2253 = vld [vmem:[%s4 + $0xc] sm:$0xf]
      %v2254 = vld [vmem:[%s4 + $0x10] sm:$0xf]
      %v2255 = vld [vmem:[%s4 + $0x14] sm:$0xf]
      %v2256 = vld [vmem:[%s4 + $0x18] sm:$0xf]
      %v2257 = vld [vmem:[%s4 + $0x1c] sm:$0xf]
      %v2258 = vld [vmem:[%s4 + $0x20] sm:$0xf]
      %v2259 = vld [vmem:[%s4 + $0x24] sm:$0xf]
      %v2260 = vld [vmem:[%s4 + $0x28] sm:$0xf]
      %v2261 = vld [vmem:[%s4 + $0x2c] sm:$0xf]
      %v2262 = vld [vmem:[%s4 + $0x30] sm:$0xf]
      %v2263 = vld [vmem:[%s4 + $0x34] sm:$0xf]
      %v2264 = vld [vmem:[%s4 + $0x38] sm:$0xf]
      %v2265 = vld [vmem:[%s4 + $0x3c] sm:$0xf]
      %v2274 = vunpack.c.l.b16 %v2242
      %v2275 = vunpack.c.l.b16 %v2243
      %v2276 = vunpack.c.l.b16 %v2244
      %v2277 = vunpack.c.l.b16 %v2245
      %v2278 = vunpack.c.l.b16 %v2246
      %v2279 = vunpack.c.l.b16 %v2247
      %v2280 = vunpack.c.l.b16 %v2248
      %v2281 = vunpack.c.l.b16 %v2249
      %v2282 = vpack.c.b16 %v2275, %v2274
      %v2283 = vpack.c.b16 %v2277, %v2276
      %v2284 = vpack.c.b16 %v2279, %v2278
      %v2285 = vpack.c.b16 %v2281, %v2280
      %v2306 = vunpack.c.l.b16 %v2250
      %v2307 = vunpack.c.l.b16 %v2251
      %v2308 = vunpack.c.l.b16 %v2252
      %v2309 = vunpack.c.l.b16 %v2253
      %v2310 = vunpack.c.l.b16 %v2254
      %v2311 = vunpack.c.l.b16 %v2255
      %v2312 = vunpack.c.l.b16 %v2256
      %v2313 = vunpack.c.l.b16 %v2257
      %v2314 = vunpack.c.l.b16 %v2258
      %v2315 = vunpack.c.l.b16 %v2259
      %v2316 = vunpack.c.l.b16 %v2260
      %v2317 = vunpack.c.l.b16 %v2261
      %v2318 = vunpack.c.l.b16 %v2262
      %v2319 = vunpack.c.l.b16 %v2263
      %v2320 = vunpack.c.l.b16 %v2264
      %v2321 = vunpack.c.l.b16 %v2265
      %v2322 = vpack.c.b16 %v2307, %v2306
      %v2323 = vpack.c.b16 %v2309, %v2308
      %v2324 = vpack.c.b16 %v2311, %v2310
      %v2325 = vpack.c.b16 %v2313, %v2312
      %v2326 = vpack.c.b16 %v2315, %v2314
      %v2327 = vpack.c.b16 %v2317, %v2316
      %v2328 = vpack.c.b16 %v2319, %v2318
      %v2329 = vpack.c.b16 %v2321, %v2320
      %2338 = vmatprep.subr.bf16.mxu0 0
      %2339 = vmatpush1.bf16.msra.mxu0 %v2329
      %2340 = vmatprep.subr.bf16.mxu0 0
      %2341 = vmatpush1.bf16.msra.mxu0 %v2328
      %2342 = vmatprep.subr.bf16.mxu0 0
      %2343 = vmatpush1.bf16.msra.mxu0 %v2327
      %2344 = vmatprep.subr.bf16.mxu0 0
      %2345 = vmatpush1.bf16.msra.mxu0 %v2326
      %2346 = vmatprep.subr.bf16.mxu0 0
      %2347 = vmatpush1.bf16.msra.mxu0 %v2325
      %2348 = vmatprep.subr.bf16.mxu0 0
      %2349 = vmatpush1.bf16.msra.mxu0 %v2324
      %2350 = vmatprep.subr.bf16.mxu0 0
      %2351 = vmatpush1.bf16.msra.mxu0 %v2323
      %2352 = vmatprep.subr.bf16.mxu0 0
      %2353 = vmatpush1.bf16.msra.mxu0 %v2322
      %2354 = vmatprep.subr.bf16.mxu0 0
      %2355 = vmatpush2.bf16.msra.mxu0 0
      %2356 = vmatprep.subr.bf16.mxu0 0
      %2357 = vmatpush2.bf16.msra.mxu0 0
      %2358 = vmatprep.subr.bf16.mxu0 0
      %2359 = vmatpush2.bf16.msra.mxu0 0
      %2360 = vmatprep.subr.bf16.mxu0 0
      %2361 = vmatpush2.bf16.msra.mxu0 0
      %2362 = vmatprep.subr.bf16.mxu0 0
      %2363 = vmatpush2.bf16.msra.mxu0 0
      %2364 = vmatprep.subr.bf16.mxu0 0
      %2365 = vmatpush2.bf16.msra.mxu0 0
      %2366 = vmatprep.subr.bf16.mxu0 0
      %2367 = vmatpush2.bf16.msra.mxu0 0
      %2368 = vmatprep.subr.bf16.mxu0 0
      %2369 = vmatpush2.bf16.msra.mxu0 0
      %2370 = vmatprep.mubr.bf16.mxu0 0
      %2371 = vmatmul.mubr.bf16.gmra.mxu0 %v2282
      %v2372 = vpop.f32.mrf.mxu0
      %v2373 = vadd.f32 0.0, %v2372
      %v2374 = vpop.f32.mrf.mxu0
      %v2375 = vpop.f32.mrf.mxu0
      %v2376 = vadd.f32 0.0, %v2375
      %v2377 = vpop.f32.mrf.mxu0
      %2378 = vmatprep.mubr.bf16.mxu0 0
      %2379 = vmatmul.mubr.bf16.gmra.mxu0 %v2283
      %v2380 = vpop.f32.mrf.mxu0
      %v2381 = vadd.f32 0.0, %v2380
      %v2382 = vpop.f32.mrf.mxu0
      %v2383 = vpop.f32.mrf.mxu0
      %v2384 = vadd.f32 0.0, %v2383
      %v2385 = vpop.f32.mrf.mxu0
      %2386 = vmatprep.mubr.bf16.mxu0 0
      %2387 = vmatmul.mubr.bf16.gmra.mxu0 %v2284
      %v2388 = vpop.f32.mrf.mxu0
      %v2389 = vadd.f32 0.0, %v2388
      %v2390 = vpop.f32.mrf.mxu0
      %v2391 = vpop.f32.mrf.mxu0
      %v2392 = vadd.f32 0.0, %v2391
      %v2393 = vpop.f32.mrf.mxu0
      %2394 = vmatprep.mubr.bf16.mxu0 0
      %2395 = vmatmul.mubr.bf16.gmra.mxu0 %v2285
      %v2396 = vpop.f32.mrf.mxu0
      %v2397 = vadd.f32 0.0, %v2396
      %v2398 = vpop.f32.mrf.mxu0
      %v2399 = vpop.f32.mrf.mxu0
      %v2400 = vadd.f32 0.0, %v2399
      %v2401 = vpop.f32.mrf.mxu0
      %2402 = vdwg.mxu0
      %v2403 = vadd.f32 %v2234, %v2373
      %v2404 = vadd.f32 %v2235, %v2376
      %v2405 = vadd.f32 %v2236, %v2381
      %v2406 = vadd.f32 %v2237, %v2384
      %v2407 = vadd.f32 %v2238, %v2389
      %v2408 = vadd.f32 %v2239, %v2392
      %v2409 = vadd.f32 %v2240, %v2397
      %v2410 = vadd.f32 %v2241, %v2400
      %v2411 = vld [vmem:[%s2] sm:$0x1]
      %v2413 = vlaneseq
      %v2414 = vshrl.u32 %v2413, 7
      %v2415 = vsub.s32 0, %v2414
      %v2416 = vrot.slane %v2411, %v2415
      %v2418 = vadd.f32 %v2403, %v2416
      %v2419 = vadd.f32 %v2404, %v2416
      %v2420 = vadd.f32 %v2405, %v2416
      %v2421 = vadd.f32 %v2406, %v2416
      %v2422 = vadd.f32 %v2407, %v2416
      %v2423 = vadd.f32 %v2408, %v2416
      %v2424 = vadd.f32 %v2409, %v2416
      %v2425 = vadd.f32 %v2410, %v2416
      %v2426 = vld [vmem:[%s5] sm:$0x1]
      %v2428 = vlaneseq
      %v2429 = vshrl.u32 %v2428, 7
      %v2430 = vsub.s32 0, %v2429
      %v2431 = vrot.slane %v2426, %v2430
      %v2433 = vadd.f32 %v2418, %v2431
      %v2434 = vadd.f32 %v2419, %v2431
      %v2435 = vadd.f32 %v2420, %v2431
      %v2436 = vadd.f32 %v2421, %v2431
      %v2437 = vadd.f32 %v2422, %v2431
      %v2438 = vadd.f32 %v2423, %v2431
      %v2439 = vadd.f32 %v2424, %v2431
      %v2440 = vadd.f32 %v2425, %v2431
      %v2441 = vmax.f32 %v2433, 0.0
      %v2442 = vmax.f32 %v2434, 0.0
      %v2443 = vmax.f32 %v2435, 0.0
      %v2444 = vmax.f32 %v2436, 0.0
      %v2445 = vmax.f32 %v2437, 0.0
      %v2446 = vmax.f32 %v2438, 0.0
      %v2447 = vmax.f32 %v2439, 0.0
      %v2448 = vmax.f32 %v2440, 0.0
      %2449 = vst [vmem:[%s271] sm:$0xff] %v2441
      %2450 = vst [vmem:[%s271 + $0x8] sm:$0xff] %v2442
      %2451 = vst [vmem:[%s271 + $0x10] sm:$0xff] %v2443
      %2452 = vst [vmem:[%s271 + $0x18] sm:$0xff] %v2444
      %2453 = vst [vmem:[%s271 + $0x20] sm:$0xff] %v2445
      %2454 = vst [vmem:[%s271 + $0x28] sm:$0xff] %v2446
      %2455 = vst [vmem:[%s271 + $0x30] sm:$0xff] %v2447
      %2456 = vst [vmem:[%s271 + $0x38] sm:$0xff] %v2448
      %p2457 = scmp.lt.s32.totalorder %s17, 1
      %s2458 = scalar_select %p2457, %s17, 1
      %s2459 = smul.addr %s2458, 8
      %s2460 = smul.addr %s2459, 8
      %s2461 = scalar_lea.vmem %s6, %s2460
      // Predicated region
      $region45: #{residual_block_forward.3} parent=43 // pred_check
        %p2462 = pneg %p171
      $region46: #{residual_block_forward.3} parent=43 // pred_check_branch
        %2464 = sbr.rel (%p2462) target = $region48
      $region47: #{residual_block_forward.3} parent=43 // pred_region
        _
      $region48: #{residual_block_forward.3} parent=43 // pred_fallthru
        _
    $region44: #{residual_block_forward.3} parent=5 // pred_fallthru
      _
    %p2465 = scmp.le.s32.totalorder 2, %s12
    // Predicated region
    $region49: #{residual_block_forward.3} parent=5 // pred_check
      %p2466 = pneg %p2465
    $region50: #{residual_block_forward.3} parent=5 // pred_check_branch
      %2468 = sbr.rel (%p2466) target = $region52
    $region51: #{residual_block_forward.3} parent=5 // pred_region
      %s2469 = ssub.s32 %s12, 2
      // Predicated region
      $region53: #{residual_block_forward.3} parent=51 // pred_check
        %p2470 = pneg %p177
      $region54: #{residual_block_forward.3} parent=51 // pred_check_branch
        %2472 = sbr.rel (%p2470) target = $region56
      $region55: #{residual_block_forward.3} parent=51 // pred_region
        %p2473 = scmp.lt.s32.totalorder %s18, 1
        %s2474 = scalar_select %p2473, %s18, 1
        %s2475 = smul.addr %s2474, 8
        %s2476 = smul.addr %s2475, 8
        %s2477 = scalar_lea.vmem %s6, %s2476
      $region56: #{residual_block_forward.3} parent=51 // pred_fallthru
        _
    $region52: #{residual_block_forward.3} parent=5 // pred_fallthru
      _
  $region6: #{residual_block_forward.3} parent=0 // loop_footer
    %s16 = sadd.s32 1, %s12
  $region7: #{residual_block_forward.3} parent=0 // loop_footer_branch
    %11 = sbr.rel target = $region3
  $region8: #{residual_block_forward.3} parent=0 // loop_exit
    _

</llo_original>
